<compile_context>
chip_gen: v7x
topology: tpu7x:2x2x1
jax: 0.10.0
libtpu: 0.0.40
codegen_flags: <defaults>
</compile_context>

<pallas_src>
import jax
import jax.numpy as jnp
from jax import lax
from jax.experimental import pallas as pl
from jax.experimental.pallas import tpu as pltpu

LANES = 128


def basic_block_kernel(x_ref, w1_ref, s1_ref, b1_ref, w2_ref, s2_ref, b2_ref,
                       out_ref, halo_ref):
    """Fused BasicBlock on one row tile.

    x_ref   : (TR, W, Cp)      f32  input rows, channels zero-padded to Cp lanes
    w1_ref  : (3, Cp, Cp)      bf16 conv1 weights, w_ref[kw][cin, cout], taps w-1|w|w+1
    s1_ref  : (1, Cp)          f32  folded bn1 scale
    b1_ref  : (1, Cp)          f32  folded bn1 bias
    w2_ref  : (3, Cp, Cp)      bf16 conv2 weights
    s2_ref  : (1, Cp)          f32  folded bn2 scale
    b2_ref  : (1, Cp)          f32  folded bn2 bias
    out_ref : (TR, W, Cp)      f32
    halo_ref: (TR, W + 2, Cp)  f32  scratch: operand with zero "same"-padding columns
    """
    TR, W, Cp = x_ref.shape
    M = TR * W

    # Zero the "same"-padding edge columns once per tile (tiny: 2*TR*Cp elems).
    zcol = jnp.zeros((TR, 1, Cp), halo_ref.dtype)
    halo_ref[:, 0:1, :] = zcol
    halo_ref[:, W + 1:W + 2, :] = zcol

    def conv3(w_ref):
        # Tap kw reads halo columns [kw, kw+W)  ==  x[:, w + kw - 1, :].
        # Three offset loads (vld slots) -> bf16 -> three K=Cp MXU dots with
        # f32 accumulation.  No im2col buffer is materialised.
        def tap(kw):
            lhs = halo_ref[:, kw:kw + W, :].reshape(M, Cp).astype(jnp.bfloat16)
            return jnp.dot(lhs, w_ref[kw], preferred_element_type=jnp.float32)
        return tap(1) + tap(0) + tap(2)

    # ---- conv1 (1x3, pad (0,1)) + folded bn1 + relu ----
    halo_ref[:, 1:W + 1, :] = x_ref[...]
    h = conv3(w1_ref)                                             # (M, Cp) f32
    h = jnp.maximum(h * s1_ref[...] + b1_ref[...], 0.0)

    # ---- conv2 (1x3, pad (0,1)) + folded bn2 + residual + relu ----
    halo_ref[:, 1:W + 1, :] = h.reshape(TR, W, Cp)                # reuse scratch
    o = conv3(w2_ref)
    o = o * s2_ref[...] + b2_ref[...]
    o = jnp.maximum(o + x_ref[...].reshape(M, Cp), 0.0)           # identity add (f32)

    out_ref[...] = o.reshape(TR, W, Cp).astype(out_ref.dtype)


def _vmem_capacity_bytes(default=64 << 20):
    """Best-effort VMEM capacity query (v5e/v6e: 128 MiB, v7x: 64 MiB per TC)."""
    try:
        info = pltpu.get_tpu_info()
        cap = getattr(info, "vmem_capacity_bytes", None)
        if cap:
            return int(cap)
    except Exception:
        pass
    return default


def _pick_tile_rows(R, W, Cp, budget_bytes, *, overhead=12, itemsize=4):
    """Largest row tile whose full working set fits the budget.

    `overhead` x one f32 tile models: 2x double-buffered input + 2x output
    blocks, the (W+2) halo scratch, and the live in-kernel intermediates
    (dot operands / h / o).  Prefers an even grid >= 2 so the "parallel" axis
    shards across both TensorCores on v7x; falls back to any grid >= 2 before
    accepting a single-step grid.
    """
    per_row = overhead * W * Cp * itemsize
    max_rows = max(1, budget_bytes // per_row)
    divisors = [d for d in range(1, R + 1) if R % d == 0 and d <= max_rows]
    even_grid = [d for d in divisors if (R // d) % 2 == 0]
    if even_grid:
        return max(even_grid)
    multi_grid = [d for d in divisors if R // d >= 2]
    if multi_grid:
        return max(multi_grid)
    return max(divisors)


def _prepare_params(w1_oihw, bn1, w2_oihw, bn2, C, Cp, eps):
    """Fold BN (eval mode) and reshape conv weights for the kernel."""
    def prep_w(w_oihw):
        # OIHW (C, C, 1, 3) -> (3, Cin, Cout), lane-padded, bf16 MXU operand.
        w = jnp.transpose(w_oihw[:, :, 0, :], (2, 1, 0))
        return jnp.pad(w, ((0, 0), (0, Cp - C), (0, Cp - C))).astype(jnp.bfloat16)

    # TODO(synk): training-mode BatchNorm (batch-statistics update) is not
    # implemented; running stats are folded into per-channel scale/bias.
    def fold(bn):
        g, b, m, v = bn
        s = g / jnp.sqrt(v + eps)
        sp = jnp.pad(s, (0, Cp - C)).reshape(1, Cp).astype(jnp.float32)
        bp = jnp.pad(b - m * s, (0, Cp - C)).reshape(1, Cp).astype(jnp.float32)
        return sp, bp          # padded lanes are 0 -> stay exactly 0 end to end

    s1, b1 = fold(bn1)
    s2, b2 = fold(bn2)
    return prep_w(w1_oihw), s1, b1, prep_w(w2_oihw), s2, b2


def basic_block_apply(x_rwcp, params, *, tile_rows=None):
    """Fused BasicBlock on activations already in the padded channels-last
    (R, W, Cp) layout; output stays in that layout so a whole stage can chain
    blocks without per-block NCHW round trips."""
    R, W, Cp = x_rwcp.shape
    w1m, s1, b1, w2m, s2, b2 = params

    cap = _vmem_capacity_bytes()
    vmem_limit = max(32 << 20, min(int(cap * 0.75), 112 << 20))
    TR = tile_rows if tile_rows is not None else _pick_tile_rows(
        R, W, Cp, budget_bytes=int(cap * 0.5))
    assert R % TR == 0

    return pl.pallas_call(
        basic_block_kernel,
        out_shape=jax.ShapeDtypeStruct((R, W, Cp), x_rwcp.dtype),
        grid_spec=pltpu.PrefetchScalarGridSpec(
            num_scalar_prefetch=0,
            grid=(R // TR,),
            in_specs=[
                pl.BlockSpec((TR, W, Cp), lambda i: (i, 0, 0)),
                pl.BlockSpec((3, Cp, Cp), lambda i: (0, 0, 0)),
                pl.BlockSpec((1, Cp), lambda i: (0, 0)),
                pl.BlockSpec((1, Cp), lambda i: (0, 0)),
                pl.BlockSpec((3, Cp, Cp), lambda i: (0, 0, 0)),
                pl.BlockSpec((1, Cp), lambda i: (0, 0)),
                pl.BlockSpec((1, Cp), lambda i: (0, 0)),
            ],
            out_specs=pl.BlockSpec((TR, W, Cp), lambda i: (i, 0, 0)),
            scratch_shapes=[pltpu.VMEM((TR, W + 2, Cp), jnp.float32)],
        ),
        compiler_params=pltpu.CompilerParams(
            dimension_semantics=("parallel",),
            vmem_limit_bytes=vmem_limit,
        ),
    )(x_rwcp, w1m, s1, b1, w2m, s2, b2)


def basic_block_forward(x_nchw, w1_oihw, bn1, w2_oihw, bn2, *, eps=1e-5,
                        tile_rows=None):
    """NCHW in / NCHW out, matching PyTorch BasicBlock with stride=1,
    downsample=None, groups=1, dilation=1 (BatchNorm in eval mode).

    For end-to-end use prefer basic_block_apply() and keep activations in the
    padded channels-last layout across a whole stage: the transpose/pad/slice
    round trips below each read+write the full tensor in HBM and should be paid
    once per stage, not once per block."""
    N, Cin, H, W = x_nchw.shape
    C = w1_oihw.shape[0]
    assert Cin == C, "residual add requires inplanes == planes (downsample=None)"

    # NOTE: for C << 128 (this demo's C=4, ResNet's C=64) padding to 128 lanes
    # inflates HBM/VMEM/MXU work by Cp/C; packing several spatial columns per
    # lane group would recover most of that but needs block-diagonal weights.
    Cp = -(-C // LANES) * LANES          # lane-dense channel count
    R = N * H

    # NCHW -> (N*H, W, Cp): channels-last, zero-padded to 128 lanes.
    x = jnp.transpose(x_nchw, (0, 2, 3, 1)).reshape(R, W, C)
    x = jnp.pad(x, ((0, 0), (0, 0), (0, Cp - C)))

    params = _prepare_params(w1_oihw, bn1, w2_oihw, bn2, C, Cp, eps)
    out = basic_block_apply(x, params, tile_rows=tile_rows)

    # drop channel padding, back to NCHW
    out = out[:, :, :C].reshape(N, H, W, C)
    return jnp.transpose(out, (0, 3, 1, 2))


def ref_forward(x, w1, bn1, w2, bn2, eps=1e-5, mxu_dtype=None):
    """Pure-JAX reference (XLA convs), eval-mode BN.  With mxu_dtype=bfloat16
    the conv operands are rounded exactly like the kernel's MXU inputs while
    accumulation stays f32 (mirrors the kernel's mixed precision)."""
    dn = ("NCHW", "OIHW", "NCHW")
    prec = lax.Precision.HIGHEST

    def cast(t):
        return t.astype(mxu_dtype).astype(jnp.float32) if mxu_dtype else t

    def bn(y, p):
        g, b, m, v = (t[None, :, None, None] for t in p)
        return g * (y - m) / jnp.sqrt(v + eps) + b

    out = lax.conv_general_dilated(cast(x), cast(w1), (1, 1), [(0, 0), (1, 1)],
                                   dimension_numbers=dn, precision=prec)
    out = jnp.maximum(bn(out, bn1), 0.0)
    out = lax.conv_general_dilated(cast(out), cast(w2), (1, 1), [(0, 0), (1, 1)],
                                   dimension_numbers=dn, precision=prec)
    out = bn(out, bn2)
    return jnp.maximum(out + x, 0.0)


if __name__ == "__main__":
    # BasicBlock(inplanes=4, planes=4, stride=1, downsample=None)
    N, C, H, W = 2, 4, 16, 16

    key = jax.random.PRNGKey(0)
    ks = jax.random.split(key, 12)

    x = jax.random.normal(ks[0], (N, C, H, W), jnp.float32)

    # conv weights in PyTorch OIHW layout: (out, in, 1, 3), bias=False
    w1 = jax.random.normal(ks[1], (C, C, 1, 3), jnp.float32) * 0.2
    w2 = jax.random.normal(ks[2], (C, C, 1, 3), jnp.float32) * 0.2

    # BatchNorm2d params: (gamma, beta, running_mean, running_var)
    bn1 = (jax.random.uniform(ks[3], (C,), minval=0.5, maxval=1.5),
           jax.random.normal(ks[4], (C,)) * 0.1,
           jax.random.normal(ks[5], (C,)) * 0.1,
           jax.random.uniform(ks[6], (C,), minval=0.5, maxval=1.5))
    bn2 = (jax.random.uniform(ks[7], (C,), minval=0.5, maxval=1.5),
           jax.random.normal(ks[8], (C,)) * 0.1,
           jax.random.normal(ks[9], (C,)) * 0.1,
           jax.random.uniform(ks[10], (C,), minval=0.5, maxval=1.5))

    out = jax.block_until_ready(basic_block_forward(x, w1, bn1, w2, bn2))
    assert out.shape == (N, C, H, W)

    # Tight check: reference with conv operands rounded to bf16 exactly like
    # the kernel's MXU inputs (f32 accumulation in both).
    ref_mx = jax.block_until_ready(
        ref_forward(x, w1, bn1, w2, bn2, mxu_dtype=jnp.bfloat16))
    # Sanity check vs the pure-f32 module: gap is only the intrinsic bf16
    # operand rounding (~2^-8 relative) of the two convolutions.
    ref_f32 = jax.block_until_ready(ref_forward(x, w1, bn1, w2, bn2))

    assert jnp.allclose(out, ref_mx, atol=5e-3, rtol=5e-3), \
        float(jnp.max(jnp.abs(out - ref_mx)))
    assert jnp.allclose(out, ref_f32, atol=5e-2, rtol=5e-2), \
        float(jnp.max(jnp.abs(out - ref_f32)))

    print("KERNEL_OK")
</pallas_src>

<mosaic_0001>
module attributes {stable_mosaic.version = 11 : i64} {
  func.func @basic_block_kernel(%arg0: i32, %arg1: memref<16x16x128xf32, #tpu.memory_space<vmem>>, %arg2: memref<3x128x128xbf16, #tpu.memory_space<vmem>>, %arg3: memref<1x128xf32, #tpu.memory_space<vmem>>, %arg4: memref<1x128xf32, #tpu.memory_space<vmem>>, %arg5: memref<3x128x128xbf16, #tpu.memory_space<vmem>>, %arg6: memref<1x128xf32, #tpu.memory_space<vmem>>, %arg7: memref<1x128xf32, #tpu.memory_space<vmem>>, %arg8: memref<16x16x128xf32, #tpu.memory_space<vmem>>, %arg9: memref<16x18x128xf32, #tpu.memory_space<vmem>>) attributes {dimension_semantics = [#tpu.dimension_semantics<parallel>], iteration_bounds = array<i64: 2>, scalar_prefetch = 0 : i64, scratch_operands = 1 : i64, tpu.core_type = #tpu.core_type<tc>, window_params = [{transform_indices = @transform_0, window_bounds = array<i64: 16, 16, 128>}, {pipeline_mode = #tpu.pipeline_mode<synchronous>, transform_indices = @transform_1, window_bounds = array<i64: 3, 128, 128>}, {pipeline_mode = #tpu.pipeline_mode<synchronous>, transform_indices = @transform_2, window_bounds = array<i64: 1, 128>}, {pipeline_mode = #tpu.pipeline_mode<synchronous>, transform_indices = @transform_3, window_bounds = array<i64: 1, 128>}, {pipeline_mode = #tpu.pipeline_mode<synchronous>, transform_indices = @transform_4, window_bounds = array<i64: 3, 128, 128>}, {pipeline_mode = #tpu.pipeline_mode<synchronous>, transform_indices = @transform_5, window_bounds = array<i64: 1, 128>}, {pipeline_mode = #tpu.pipeline_mode<synchronous>, transform_indices = @transform_6, window_bounds = array<i64: 1, 128>}, {transform_indices = @transform_7, window_bounds = array<i64: 16, 16, 128>}]} {
    %cst = arith.constant 0.000000e+00 : f32
    %0 = vector.broadcast %cst : f32 to vector<16x1x128xf32>
    %c0 = arith.constant 0 : index
    %c0_0 = arith.constant 0 : index
    %c0_1 = arith.constant 0 : index
    %1 = vector.load %arg9[%c0, %c0_0, %c0_1] : memref<16x18x128xf32, #tpu.memory_space<vmem>>, vector<16x1x128xf32>
    tpu.vector_store %arg9[%c0, %c0_0, %c0_1], %0 {strides = array<i32>} : memref<16x18x128xf32, #tpu.memory_space<vmem>>, vector<16x1x128xf32>,
    %c0_2 = arith.constant 0 : index
    %c17 = arith.constant 17 : index
    %c0_3 = arith.constant 0 : index
    %2 = vector.load %arg9[%c0_2, %c17, %c0_3] : memref<16x18x128xf32, #tpu.memory_space<vmem>>, vector<16x1x128xf32>
    tpu.vector_store %arg9[%c0_2, %c17, %c0_3], %0 {strides = array<i32>} : memref<16x18x128xf32, #tpu.memory_space<vmem>>, vector<16x1x128xf32>,
    %c0_4 = arith.constant 0 : index
    %c0_5 = arith.constant 0 : index
    %c0_6 = arith.constant 0 : index
    %3 = vector.load %arg1[%c0_4, %c0_5, %c0_6] : memref<16x16x128xf32, #tpu.memory_space<vmem>>, vector<16x16x128xf32>
    %c0_7 = arith.constant 0 : index
    %c1 = arith.constant 1 : index
    %c0_8 = arith.constant 0 : index
    %4 = vector.load %arg9[%c0_7, %c1, %c0_8] : memref<16x18x128xf32, #tpu.memory_space<vmem>>, vector<16x16x128xf32>
    tpu.vector_store %arg9[%c0_7, %c1, %c0_8], %3 {strides = array<i32>} : memref<16x18x128xf32, #tpu.memory_space<vmem>>, vector<16x16x128xf32>,
    %c0_9 = arith.constant 0 : index
    %c1_10 = arith.constant 1 : index
    %c0_11 = arith.constant 0 : index
    %5 = vector.load %arg9[%c0_9, %c1_10, %c0_11] : memref<16x18x128xf32, #tpu.memory_space<vmem>>, vector<16x16x128xf32>
    %6 = vector.shape_cast %5 : vector<16x16x128xf32> to vector<256x128xf32>
    %7 = arith.truncf %6 : vector<256x128xf32> to vector<256x128xbf16>
    %c1_12 = arith.constant 1 : index
    %c0_13 = arith.constant 0 : index
    %c0_14 = arith.constant 0 : index
    %8 = vector.load %arg2[%c1_12, %c0_13, %c0_14] : memref<3x128x128xbf16, #tpu.memory_space<vmem>>, vector<1x128x128xbf16>
    %9 = vector.shape_cast %8 : vector<1x128x128xbf16> to vector<128x128xbf16>
    %cst_15 = arith.constant dense<0.000000e+00> : vector<256x128xf32>
    %10 = tpu.matmul %7, %9, %cst_15 {dimension_numbers = #tpu.dot_dimension_numbers<[1], [0], [0], [1], [0, 0, 1, 1], [], []>} : vector<256x128xbf16>, vector<128x128xbf16>, vector<256x128xf32> -> vector<256x128xf32>
    %c0_16 = arith.constant 0 : index
    %c0_17 = arith.constant 0 : index
    %c0_18 = arith.constant 0 : index
    %11 = vector.load %arg9[%c0_16, %c0_17, %c0_18] : memref<16x18x128xf32, #tpu.memory_space<vmem>>, vector<16x16x128xf32>
    %12 = vector.shape_cast %11 : vector<16x16x128xf32> to vector<256x128xf32>
    %13 = arith.truncf %12 : vector<256x128xf32> to vector<256x128xbf16>
    %c0_19 = arith.constant 0 : index
    %c0_20 = arith.constant 0 : index
    %c0_21 = arith.constant 0 : index
    %14 = vector.load %arg2[%c0_19, %c0_20, %c0_21] : memref<3x128x128xbf16, #tpu.memory_space<vmem>>, vector<1x128x128xbf16>
    %15 = vector.shape_cast %14 : vector<1x128x128xbf16> to vector<128x128xbf16>
    %cst_22 = arith.constant dense<0.000000e+00> : vector<256x128xf32>
    %16 = tpu.matmul %13, %15, %cst_22 {dimension_numbers = #tpu.dot_dimension_numbers<[1], [0], [0], [1], [0, 0, 1, 1], [], []>} : vector<256x128xbf16>, vector<128x128xbf16>, vector<256x128xf32> -> vector<256x128xf32>
    %17 = arith.addf %10, %16 : vector<256x128xf32>
    %c0_23 = arith.constant 0 : index
    %c2 = arith.constant 2 : index
    %c0_24 = arith.constant 0 : index
    %18 = vector.load %arg9[%c0_23, %c2, %c0_24] : memref<16x18x128xf32, #tpu.memory_space<vmem>>, vector<16x16x128xf32>
    %19 = vector.shape_cast %18 : vector<16x16x128xf32> to vector<256x128xf32>
    %20 = arith.truncf %19 : vector<256x128xf32> to vector<256x128xbf16>
    %c2_25 = arith.constant 2 : index
    %c0_26 = arith.constant 0 : index
    %c0_27 = arith.constant 0 : index
    %21 = vector.load %arg2[%c2_25, %c0_26, %c0_27] : memref<3x128x128xbf16, #tpu.memory_space<vmem>>, vector<1x128x128xbf16>
    %22 = vector.shape_cast %21 : vector<1x128x128xbf16> to vector<128x128xbf16>
    %cst_28 = arith.constant dense<0.000000e+00> : vector<256x128xf32>
    %23 = tpu.matmul %20, %22, %cst_28 {dimension_numbers = #tpu.dot_dimension_numbers<[1], [0], [0], [1], [0, 0, 1, 1], [], []>} : vector<256x128xbf16>, vector<128x128xbf16>, vector<256x128xf32> -> vector<256x128xf32>
    %24 = arith.addf %17, %23 : vector<256x128xf32>
    %c0_29 = arith.constant 0 : index
    %c0_30 = arith.constant 0 : index
    %25 = vector.load %arg3[%c0_29, %c0_30] : memref<1x128xf32, #tpu.memory_space<vmem>>, vector<1x128xf32>
    %26 = vector.broadcast %25 : vector<1x128xf32> to vector<256x128xf32>
    %27 = arith.mulf %24, %26 : vector<256x128xf32>
    %c0_31 = arith.constant 0 : index
    %c0_32 = arith.constant 0 : index
    %28 = vector.load %arg4[%c0_31, %c0_32] : memref<1x128xf32, #tpu.memory_space<vmem>>, vector<1x128xf32>
    %29 = vector.broadcast %28 : vector<1x128xf32> to vector<256x128xf32>
    %30 = arith.addf %27, %29 : vector<256x128xf32>
    %cst_33 = arith.constant 0.000000e+00 : f32
    %31 = vector.broadcast %cst_33 : f32 to vector<256x128xf32>
    %32 = arith.maximumf %30, %31 : vector<256x128xf32>
    %33 = vector.shape_cast %32 : vector<256x128xf32> to vector<16x16x128xf32>
    %c0_34 = arith.constant 0 : index
    %c1_35 = arith.constant 1 : index
    %c0_36 = arith.constant 0 : index
    %34 = vector.load %arg9[%c0_34, %c1_35, %c0_36] : memref<16x18x128xf32, #tpu.memory_space<vmem>>, vector<16x16x128xf32>
    tpu.vector_store %arg9[%c0_34, %c1_35, %c0_36], %33 {strides = array<i32>} : memref<16x18x128xf32, #tpu.memory_space<vmem>>, vector<16x16x128xf32>,
    %c0_37 = arith.constant 0 : index
    %c1_38 = arith.constant 1 : index
    %c0_39 = arith.constant 0 : index
    %35 = vector.load %arg9[%c0_37, %c1_38, %c0_39] : memref<16x18x128xf32, #tpu.memory_space<vmem>>, vector<16x16x128xf32>
    %36 = vector.shape_cast %35 : vector<16x16x128xf32> to vector<256x128xf32>
    %37 = arith.truncf %36 : vector<256x128xf32> to vector<256x128xbf16>
    %c1_40 = arith.constant 1 : index
    %c0_41 = arith.constant 0 : index
    %c0_42 = arith.constant 0 : index
    %38 = vector.load %arg5[%c1_40, %c0_41, %c0_42] : memref<3x128x128xbf16, #tpu.memory_space<vmem>>, vector<1x128x128xbf16>
    %39 = vector.shape_cast %38 : vector<1x128x128xbf16> to vector<128x128xbf16>
    %cst_43 = arith.constant dense<0.000000e+00> : vector<256x128xf32>
    %40 = tpu.matmul %37, %39, %cst_43 {dimension_numbers = #tpu.dot_dimension_numbers<[1], [0], [0], [1], [0, 0, 1, 1], [], []>} : vector<256x128xbf16>, vector<128x128xbf16>, vector<256x128xf32> -> vector<256x128xf32>
    %c0_44 = arith.constant 0 : index
    %c0_45 = arith.constant 0 : index
    %c0_46 = arith.constant 0 : index
    %41 = vector.load %arg9[%c0_44, %c0_45, %c0_46] : memref<16x18x128xf32, #tpu.memory_space<vmem>>, vector<16x16x128xf32>
    %42 = vector.shape_cast %41 : vector<16x16x128xf32> to vector<256x128xf32>
    %43 = arith.truncf %42 : vector<256x128xf32> to vector<256x128xbf16>
    %c0_47 = arith.constant 0 : index
    %c0_48 = arith.constant 0 : index
    %c0_49 = arith.constant 0 : index
    %44 = vector.load %arg5[%c0_47, %c0_48, %c0_49] : memref<3x128x128xbf16, #tpu.memory_space<vmem>>, vector<1x128x128xbf16>
    %45 = vector.shape_cast %44 : vector<1x128x128xbf16> to vector<128x128xbf16>
    %cst_50 = arith.constant dense<0.000000e+00> : vector<256x128xf32>
    %46 = tpu.matmul %43, %45, %cst_50 {dimension_numbers = #tpu.dot_dimension_numbers<[1], [0], [0], [1], [0, 0, 1, 1], [], []>} : vector<256x128xbf16>, vector<128x128xbf16>, vector<256x128xf32> -> vector<256x128xf32>
    %47 = arith.addf %40, %46 : vector<256x128xf32>
    %c0_51 = arith.constant 0 : index
    %c2_52 = arith.constant 2 : index
    %c0_53 = arith.constant 0 : index
    %48 = vector.load %arg9[%c0_51, %c2_52, %c0_53] : memref<16x18x128xf32, #tpu.memory_space<vmem>>, vector<16x16x128xf32>
    %49 = vector.shape_cast %48 : vector<16x16x128xf32> to vector<256x128xf32>
    %50 = arith.truncf %49 : vector<256x128xf32> to vector<256x128xbf16>
    %c2_54 = arith.constant 2 : index
    %c0_55 = arith.constant 0 : index
    %c0_56 = arith.constant 0 : index
    %51 = vector.load %arg5[%c2_54, %c0_55, %c0_56] : memref<3x128x128xbf16, #tpu.memory_space<vmem>>, vector<1x128x128xbf16>
    %52 = vector.shape_cast %51 : vector<1x128x128xbf16> to vector<128x128xbf16>
    %cst_57 = arith.constant dense<0.000000e+00> : vector<256x128xf32>
    %53 = tpu.matmul %50, %52, %cst_57 {dimension_numbers = #tpu.dot_dimension_numbers<[1], [0], [0], [1], [0, 0, 1, 1], [], []>} : vector<256x128xbf16>, vector<128x128xbf16>, vector<256x128xf32> -> vector<256x128xf32>
    %54 = arith.addf %47, %53 : vector<256x128xf32>
    %c0_58 = arith.constant 0 : index
    %c0_59 = arith.constant 0 : index
    %55 = vector.load %arg6[%c0_58, %c0_59] : memref<1x128xf32, #tpu.memory_space<vmem>>, vector<1x128xf32>
    %56 = vector.broadcast %55 : vector<1x128xf32> to vector<256x128xf32>
    %57 = arith.mulf %54, %56 : vector<256x128xf32>
    %c0_60 = arith.constant 0 : index
    %c0_61 = arith.constant 0 : index
    %58 = vector.load %arg7[%c0_60, %c0_61] : memref<1x128xf32, #tpu.memory_space<vmem>>, vector<1x128xf32>
    %59 = vector.broadcast %58 : vector<1x128xf32> to vector<256x128xf32>
    %60 = arith.addf %57, %59 : vector<256x128xf32>
    %c0_62 = arith.constant 0 : index
    %c0_63 = arith.constant 0 : index
    %c0_64 = arith.constant 0 : index
    %61 = vector.load %arg1[%c0_62, %c0_63, %c0_64] : memref<16x16x128xf32, #tpu.memory_space<vmem>>, vector<16x16x128xf32>
    %62 = vector.shape_cast %61 : vector<16x16x128xf32> to vector<256x128xf32>
    %63 = arith.addf %60, %62 : vector<256x128xf32>
    %cst_65 = arith.constant 0.000000e+00 : f32
    %64 = vector.broadcast %cst_65 : f32 to vector<256x128xf32>
    %65 = arith.maximumf %63, %64 : vector<256x128xf32>
    %66 = vector.shape_cast %65 : vector<256x128xf32> to vector<16x16x128xf32>
    %c0_66 = arith.constant 0 : index
    %c0_67 = arith.constant 0 : index
    %c0_68 = arith.constant 0 : index
    %67 = vector.load %arg8[%c0_66, %c0_67, %c0_68] : memref<16x16x128xf32, #tpu.memory_space<vmem>>, vector<16x16x128xf32>
    tpu.vector_store %arg8[%c0_66, %c0_67, %c0_68], %66 {strides = array<i32>} : memref<16x16x128xf32, #tpu.memory_space<vmem>>, vector<16x16x128xf32>,
    return
  }
  func.func @transform_0(%arg0: i32) -> (i32, i32, i32) {
    %c0_i32 = arith.constant 0 : i32
    %c0_i32_0 = arith.constant 0 : i32
    %c0_i32_1 = arith.constant 0 : i32
    return %arg0, %c0_i32, %c0_i32_0 : i32, i32, i32
  }
  func.func @transform_1(%arg0: i32) -> (i32, i32, i32) {
    %c0_i32 = arith.constant 0 : i32
    %c0_i32_0 = arith.constant 0 : i32
    %c0_i32_1 = arith.constant 0 : i32
    %c0_i32_2 = arith.constant 0 : i32
    return %c0_i32, %c0_i32_0, %c0_i32_1 : i32, i32, i32
  }
  func.func @transform_2(%arg0: i32) -> (i32, i32) {
    %c0_i32 = arith.constant 0 : i32
    %c0_i32_0 = arith.constant 0 : i32
    %c0_i32_1 = arith.constant 0 : i32
    return %c0_i32, %c0_i32_0 : i32, i32
  }
  func.func @transform_3(%arg0: i32) -> (i32, i32) {
    %c0_i32 = arith.constant 0 : i32
    %c0_i32_0 = arith.constant 0 : i32
    %c0_i32_1 = arith.constant 0 : i32
    return %c0_i32, %c0_i32_0 : i32, i32
  }
  func.func @transform_4(%arg0: i32) -> (i32, i32, i32) {
    %c0_i32 = arith.constant 0 : i32
    %c0_i32_0 = arith.constant 0 : i32
    %c0_i32_1 = arith.constant 0 : i32
    %c0_i32_2 = arith.constant 0 : i32
    return %c0_i32, %c0_i32_0, %c0_i32_1 : i32, i32, i32
  }
  func.func @transform_5(%arg0: i32) -> (i32, i32) {
    %c0_i32 = arith.constant 0 : i32
    %c0_i32_0 = arith.constant 0 : i32
    %c0_i32_1 = arith.constant 0 : i32
    return %c0_i32, %c0_i32_0 : i32, i32
  }
  func.func @transform_6(%arg0: i32) -> (i32, i32) {
    %c0_i32 = arith.constant 0 : i32
    %c0_i32_0 = arith.constant 0 : i32
    %c0_i32_1 = arith.constant 0 : i32
    return %c0_i32, %c0_i32_0 : i32, i32
  }
  func.func @transform_7(%arg0: i32) -> (i32, i32, i32) {
    %c0_i32 = arith.constant 0 : i32
    %c0_i32_0 = arith.constant 0 : i32
    %c0_i32_1 = arith.constant 0 : i32
    return %arg0, %c0_i32, %c0_i32_0 : i32, i32, i32
  }
}

</mosaic_0001>

<llo_original>
// kernel: tpu_custom_call.1
$region0: #{tpu_custom_call.1}
  #allocation0 [shape = 'u32[]', space=smem, size = 0x4, offset = 0x4, fixed_abs, tag = 'smem constant byte address 0x4 - core index']
  #allocation1 [shape = 'u32[144,128]{1,0:T(1,128)}', space=vmem, size = 0x12000, scoped, tag = 'internal scratch']
  #allocation2 [shape = 'f32[16,18,128]{2,1,0:T(8,128)}', space=vmem, size = 0x30000, scoped, tag = 'scratch operand']
  %s0 = inlined_call_operand.hbm [shape: f32[32,16,128], index: 0, kind: input, shape index: {}]
  %s1 = inlined_call_operand.hbm [shape: bf16[3,128,128], index: 1, kind: input, shape index: {}]
  %s2 = inlined_call_operand.vmem [shape: f32[1,128], index: 2, kind: input, shape index: {}]
  %s3 = inlined_call_operand.vmem [shape: f32[1,128], index: 3, kind: input, shape index: {}]
  %s4 = inlined_call_operand.hbm [shape: bf16[3,128,128], index: 4, kind: input, shape index: {}]
  %s5 = inlined_call_operand.vmem [shape: f32[1,128], index: 5, kind: input, shape index: {}]
  %s6 = inlined_call_operand.vmem [shape: f32[1,128], index: 6, kind: input, shape index: {}]
  %s7 = inlined_call_operand.hbm [shape: f32[32,16,128], index: 7, kind: output, shape index: {}]
  %s8 = sld [smem:[#allocation0]]
  $region73: #{tpu_custom_call.1} parent=0
    _
  %s10 = ssub.s32 1, %s8
  %s11 = scalar_select 0, %s10, %s8
  $region1: #{tpu_custom_call.1} parent=0
    #allocation3 [shape = 'u8[262144]{0}', space=vmem, size = 0x40000, scoped, tag = 'input window, operand 0']
    #allocation4 [shape = 's32[2]{0}', space=sflag, size = 0x8, scoped, tag = 'scoped memory for tpu_custom_call.1']
    #allocation5 [shape = 's32[2]{0}', space=sflag, size = 0x8, scoped, tag = 'scoped memory for tpu_custom_call.1']
    #allocation6 [shape = 'u8[98304]{0}', space=vmem, size = 0x18000, scoped, tag = 'input window, operand 1, single buffered']
    #allocation7 [shape = 's32[1]{0}', space=sflag, size = 0x4, scoped, tag = 'scoped memory for tpu_custom_call.1']
    #allocation8 [shape = 'u8[98304]{0}', space=vmem, size = 0x18000, scoped, tag = 'input window, operand 4, single buffered']
    #allocation9 [shape = 'u8[262144]{0}', space=vmem, size = 0x40000, scoped, tag = 'output window, operand 0']
    %12 = vsyncpa [#allocation4], 0
    %s13 = scalar_lea.sflag [#allocation4], 1
    %14 = vsyncpa %s13, 0
    %15 = vsyncpa [#allocation7], 0
    %16 = vsyncpa [#allocation5], 0
    %s17 = scalar_lea.sflag [#allocation5], 1
    %18 = vsyncpa %s17, 0
    loop: start=0, step=1, limit=4
    $region2: #{tpu_custom_call.1} parent=1 // loop_pre_header
      _
    $region3: #{tpu_custom_call.1} parent=1 // loop_header
      %s20 = sphi 0, %s24
      %p21 = scmp.ge.s32.totalorder %s20, 4
      %s30 = sphi 0, %s32
      %s33 = sphi 0, %s30
      %s34 = sphi 0, %s33
      %s50 = sphi 0, %s34
      %s54 = sphi 0, %s54
      %s56 = sphi 0, %s54
      %s57 = sphi 0, %s56
      %s71 = sphi 0, %s57
      %s75 = sphi 0, %s75
      %s77 = sphi 0, %s75
      %s78 = sphi 0, %s77
      %s92 = sphi 0, %s78
      %s96 = sphi 0, %s96
      %s98 = sphi 0, %s96
      %s99 = sphi 0, %s98
      %s113 = sphi 0, %s99
      %s117 = sphi 0, %s117
      %s119 = sphi 0, %s117
      %s120 = sphi 0, %s119
      %s134 = sphi 0, %s120
      %s138 = sphi 0, %s138
      %s140 = sphi 0, %s138
      %s141 = sphi 0, %s140
      %s155 = sphi 0, %s141
      %s159 = sphi 0, %s159
      %s161 = sphi 0, %s159
      %s162 = sphi 0, %s161
      %s176 = sphi 0, %s162
      %s182 = sphi 0, %s184
      %s185 = sphi 0, %s182
      %s186 = sphi 0, %s185
      %s202 = sphi 0, %s186
    $region4: #{tpu_custom_call.1} parent=1 // loop_header_branch
      %23 = sbr.rel (%p21) target = $region8
    $region5: #{tpu_custom_call.1} parent=1 // loop_body
      %s25 = ssub.s32 %s20, 1
      %s26 = ssub.s32 %s20, 2
      %s27 = sadd.s32 %s20, 1
      %s28 = ssub.s32 %s20, %s27
      %p29 = scmp.eq.s32.totalorder %s28, 0
      %s31 = sadd.s32 %s30, 1
      %s32 = scalar_select %p29, %s30, %s31
      %p35 = pneg %p29
      %p36 = scmp.eq.s32.totalorder %s20, 1
      %p37 = por %p35, %p36
      %p38 = scmp.ne.s32.totalorder %s30, %s33
      %p39 = scmp.eq.s32.totalorder %s20, 0
      %p40 = por %p38, %p39
      %p41 = scmp.ne.s32.totalorder %s30, %s33
      %p42 = scmp.eq.s32.totalorder %s25, 1
      %p43 = por %p41, %p42
      %p44 = scmp.ne.s32.totalorder %s33, %s34
      %p45 = scmp.eq.s32.totalorder %s25, 0
      %p46 = por %p44, %p45
      %p47 = scmp.ne.s32.totalorder %s33, %s34
      %p48 = scmp.eq.s32.totalorder %s26, 1
      %p49 = por %p47, %p48
      %p51 = scmp.ne.s32.totalorder %s34, %s50
      %p52 = scmp.eq.s32.totalorder %s26, 0
      %p53 = por %p51, %p52
      %s55 = sadd.s32 %s54, 1
      %p58 = scmp.eq.s32.totalorder %s20, 1
      %p59 = scmp.ne.s32.totalorder %s54, %s56
      %p60 = scmp.eq.s32.totalorder %s20, 0
      %p61 = por %p59, %p60
      %p62 = scmp.ne.s32.totalorder %s54, %s56
      %p63 = scmp.eq.s32.totalorder %s25, 1
      %p64 = por %p62, %p63
      %p65 = scmp.ne.s32.totalorder %s56, %s57
      %p66 = scmp.eq.s32.totalorder %s25, 0
      %p67 = por %p65, %p66
      %p68 = scmp.ne.s32.totalorder %s56, %s57
      %p69 = scmp.eq.s32.totalorder %s26, 1
      %p70 = por %p68, %p69
      %p72 = scmp.ne.s32.totalorder %s57, %s71
      %p73 = scmp.eq.s32.totalorder %s26, 0
      %p74 = por %p72, %p73
      %s76 = sadd.s32 %s75, 1
      %p79 = scmp.eq.s32.totalorder %s20, 1
      %p80 = scmp.ne.s32.totalorder %s75, %s77
      %p81 = scmp.eq.s32.totalorder %s20, 0
      %p82 = por %p80, %p81
      %p83 = scmp.ne.s32.totalorder %s75, %s77
      %p84 = scmp.eq.s32.totalorder %s25, 1
      %p85 = por %p83, %p84
      %p86 = scmp.ne.s32.totalorder %s77, %s78
      %p87 = scmp.eq.s32.totalorder %s25, 0
      %p88 = por %p86, %p87
      %p89 = scmp.ne.s32.totalorder %s77, %s78
      %p90 = scmp.eq.s32.totalorder %s26, 1
      %p91 = por %p89, %p90
      %p93 = scmp.ne.s32.totalorder %s78, %s92
      %p94 = scmp.eq.s32.totalorder %s26, 0
      %p95 = por %p93, %p94
      %s97 = sadd.s32 %s96, 1
      %p100 = scmp.eq.s32.totalorder %s20, 1
      %p101 = scmp.ne.s32.totalorder %s96, %s98
      %p102 = scmp.eq.s32.totalorder %s20, 0
      %p103 = por %p101, %p102
      %p104 = scmp.ne.s32.totalorder %s96, %s98
      %p105 = scmp.eq.s32.totalorder %s25, 1
      %p106 = por %p104, %p105
      %p107 = scmp.ne.s32.totalorder %s98, %s99
      %p108 = scmp.eq.s32.totalorder %s25, 0
      %p109 = por %p107, %p108
      %p110 = scmp.ne.s32.totalorder %s98, %s99
      %p111 = scmp.eq.s32.totalorder %s26, 1
      %p112 = por %p110, %p111
      %p114 = scmp.ne.s32.totalorder %s99, %s113
      %p115 = scmp.eq.s32.totalorder %s26, 0
      %p116 = por %p114, %p115
      %s118 = sadd.s32 %s117, 1
      %p121 = scmp.eq.s32.totalorder %s20, 1
      %p122 = scmp.ne.s32.totalorder %s117, %s119
      %p123 = scmp.eq.s32.totalorder %s20, 0
      %p124 = por %p122, %p123
      %p125 = scmp.ne.s32.totalorder %s117, %s119
      %p126 = scmp.eq.s32.totalorder %s25, 1
      %p127 = por %p125, %p126
      %p128 = scmp.ne.s32.totalorder %s119, %s120
      %p129 = scmp.eq.s32.totalorder %s25, 0
      %p130 = por %p128, %p129
      %p131 = scmp.ne.s32.totalorder %s119, %s120
      %p132 = scmp.eq.s32.totalorder %s26, 1
      %p133 = por %p131, %p132
      %p135 = scmp.ne.s32.totalorder %s120, %s134
      %p136 = scmp.eq.s32.totalorder %s26, 0
      %p137 = por %p135, %p136
      %s139 = sadd.s32 %s138, 1
      %p142 = scmp.eq.s32.totalorder %s20, 1
      %p143 = scmp.ne.s32.totalorder %s138, %s140
      %p144 = scmp.eq.s32.totalorder %s20, 0
      %p145 = por %p143, %p144
      %p146 = scmp.ne.s32.totalorder %s138, %s140
      %p147 = scmp.eq.s32.totalorder %s25, 1
      %p148 = por %p146, %p147
      %p149 = scmp.ne.s32.totalorder %s140, %s141
      %p150 = scmp.eq.s32.totalorder %s25, 0
      %p151 = por %p149, %p150
      %p152 = scmp.ne.s32.totalorder %s140, %s141
      %p153 = scmp.eq.s32.totalorder %s26, 1
      %p154 = por %p152, %p153
      %p156 = scmp.ne.s32.totalorder %s141, %s155
      %p157 = scmp.eq.s32.totalorder %s26, 0
      %p158 = por %p156, %p157
      %s160 = sadd.s32 %s159, 1
      %p163 = scmp.eq.s32.totalorder %s20, 1
      %p164 = scmp.ne.s32.totalorder %s159, %s161
      %p165 = scmp.eq.s32.totalorder %s20, 0
      %p166 = por %p164, %p165
      %p167 = scmp.ne.s32.totalorder %s159, %s161
      %p168 = scmp.eq.s32.totalorder %s25, 1
      %p169 = por %p167, %p168
      %p170 = scmp.ne.s32.totalorder %s161, %s162
      %p171 = scmp.eq.s32.totalorder %s25, 0
      %p172 = por %p170, %p171
      %p173 = scmp.ne.s32.totalorder %s161, %s162
      %p174 = scmp.eq.s32.totalorder %s26, 1
      %p175 = por %p173, %p174
      %p177 = scmp.ne.s32.totalorder %s162, %s176
      %p178 = scmp.eq.s32.totalorder %s26, 0
      %p179 = por %p177, %p178
      %s180 = ssub.s32 %s20, %s27
      %p181 = scmp.eq.s32.totalorder %s180, 0
      %s183 = sadd.s32 %s182, 1
      %s184 = scalar_select %p181, %s182, %s183
      %p187 = pneg %p181
      %p188 = scmp.eq.s32.totalorder %s20, 1
      %p189 = por %p187, %p188
      %p190 = scmp.ne.s32.totalorder %s182, %s185
      %p191 = scmp.eq.s32.totalorder %s20, 0
      %p192 = por %p190, %p191
      %p193 = scmp.ne.s32.totalorder %s182, %s185
      %p194 = scmp.eq.s32.totalorder %s25, 1
      %p195 = por %p193, %p194
      %p196 = scmp.ne.s32.totalorder %s185, %s186
      %p197 = scmp.eq.s32.totalorder %s25, 0
      %p198 = por %p196, %p197
      %p199 = scmp.ne.s32.totalorder %s185, %s186
      %p200 = scmp.eq.s32.totalorder %s26, 1
      %p201 = por %p199, %p200
      %p203 = scmp.ne.s32.totalorder %s186, %s202
      %p204 = scmp.eq.s32.totalorder %s26, 0
      %p205 = por %p203, %p204
      %p206 = scmp.le.s32.totalorder 1, %s20
      %p207 = scmp.lt.s32.totalorder %s20, 3
      %p208 = pnand %p206, %p207
      %p209 = pneg %p208
      // Predicated region
      $region9: #{tpu_custom_call.1} parent=5 // pred_check
        _
      $region10: #{tpu_custom_call.1} parent=5 // pred_check_branch
        %211 = sbr.rel (%p208) target = $region12
      $region11: #{tpu_custom_call.1} parent=5 // pred_region
        %s212 = ssub.s32 %s20, 1
        // Predicated region
        $region13: #{tpu_custom_call.1} parent=11 // pred_check
          %p213 = pneg %p67
        $region14: #{tpu_custom_call.1} parent=11 // pred_check_branch
          %215 = sbr.rel (%p213) target = $region16
        $region15: #{tpu_custom_call.1} parent=11 // pred_region
          %s217 = ssub.s32 3072, 3072
          %218 = vsyncadd [#allocation7], %s217
          %s219 = sshll.u32 [#allocation6], 4
          %s220 = int_to_ptr.vmem [resolvable:$true] %s219
          %225 = dma.hbm_to_vmem [thread:$0]  %s1, 3072, %s220, [#allocation7], 64, 64, 4
        $region16: #{tpu_custom_call.1} parent=11 // pred_fallthru
          _
        // Predicated region
        $region17: #{tpu_custom_call.1} parent=11 // pred_check
          %p226 = pneg %p88
        $region18: #{tpu_custom_call.1} parent=11 // pred_check_branch
          %228 = sbr.rel (%p226) target = $region20
        $region19: #{tpu_custom_call.1} parent=11 // pred_region
          _
        $region20: #{tpu_custom_call.1} parent=11 // pred_fallthru
          _
        // Predicated region
        $region21: #{tpu_custom_call.1} parent=11 // pred_check
          %p229 = pneg %p109
        $region22: #{tpu_custom_call.1} parent=11 // pred_check_branch
          %231 = sbr.rel (%p229) target = $region24
        $region23: #{tpu_custom_call.1} parent=11 // pred_region
          _
        $region24: #{tpu_custom_call.1} parent=11 // pred_fallthru
          _
        // Predicated region
        $region25: #{tpu_custom_call.1} parent=11 // pred_check
          %p232 = pneg %p130
        $region26: #{tpu_custom_call.1} parent=11 // pred_check_branch
          %234 = sbr.rel (%p232) target = $region28
        $region27: #{tpu_custom_call.1} parent=11 // pred_region
          %s236 = ssub.s32 3072, 3072
          %237 = vsyncadd [#allocation7], %s236
          %s238 = sshll.u32 [#allocation8], 4
          %s239 = int_to_ptr.vmem [resolvable:$true] %s238
          %244 = dma.hbm_to_vmem [thread:$0]  %s4, 3072, %s239, [#allocation7], 64, 64, 4
        $region28: #{tpu_custom_call.1} parent=11 // pred_fallthru
          _
        // Predicated region
        $region29: #{tpu_custom_call.1} parent=11 // pred_check
          %p245 = pneg %p151
        $region30: #{tpu_custom_call.1} parent=11 // pred_check_branch
          %247 = sbr.rel (%p245) target = $region32
        $region31: #{tpu_custom_call.1} parent=11 // pred_region
          _
        $region32: #{tpu_custom_call.1} parent=11 // pred_fallthru
          _
        // Predicated region
        $region33: #{tpu_custom_call.1} parent=11 // pred_check
          %p248 = pneg %p172
        $region34: #{tpu_custom_call.1} parent=11 // pred_check_branch
          %250 = sbr.rel (%p248) target = $region36
        $region35: #{tpu_custom_call.1} parent=11 // pred_region
          _
        $region36: #{tpu_custom_call.1} parent=11 // pred_fallthru
          _
      $region12: #{tpu_custom_call.1} parent=5 // pred_fallthru
        _
      %p251 = scmp.lt.s32.totalorder %s20, 2
      // Predicated region
      $region37: #{tpu_custom_call.1} parent=5 // pred_check
        %p252 = pneg %p251
      $region38: #{tpu_custom_call.1} parent=5 // pred_check_branch
        %254 = sbr.rel (%p252) target = $region40
      $region39: #{tpu_custom_call.1} parent=5 // pred_region
        // Predicated region
        $region41: #{tpu_custom_call.1} parent=39 // pred_check
          %p255 = pneg %p40
        $region42: #{tpu_custom_call.1} parent=39 // pred_check_branch
          %257 = sbr.rel (%p255) target = $region44
        $region43: #{tpu_custom_call.1} parent=39 // pred_region
          %s258 = sand.u32 %s30, 1
          %s259 = scalar_lea.sflag [#allocation4], %s258
          %s260 = sand.u32 %s30, 1
          %s261 = smul.addr %s260, 256
          %s262 = scalar_lea.vmem [#allocation3], %s261
          %s263 = smul.u32 16, %s20
          %s265 = ssub.s32 4096, 4096
          %266 = vsyncadd %s259, %s265
          %s267 = smul.addr %s263, 2
          %s268 = smul.addr %s267, 128
          %s269 = scalar_lea.hbm %s0, %s268
          %s270 = sshll.u32 %s262, 4
          %s271 = int_to_ptr.vmem [resolvable:$true] %s270
          %276 = dma.hbm_to_vmem [thread:$0]  %s269, 4096, %s271, %s259, 128, 128, 8
        $region44: #{tpu_custom_call.1} parent=39 // pred_fallthru
          _
      $region40: #{tpu_custom_call.1} parent=5 // pred_fallthru
        _
      %p277 = scmp.le.s32.totalorder 1, %s20
      %p278 = scmp.lt.s32.totalorder %s20, 3
      %p279 = pnand %p277, %p278
      %p280 = pneg %p279
      // Predicated region
      $region45: #{tpu_custom_call.1} parent=5 // pred_check
        _
      $region46: #{tpu_custom_call.1} parent=5 // pred_check_branch
        %282 = sbr.rel (%p279) target = $region48
      $region47: #{tpu_custom_call.1} parent=5 // pred_region
        %s283 = ssub.s32 %s20, 1
        %s284 = sand.u32 %s33, 1
        %s285 = scalar_lea.sflag [#allocation4], %s284
        %s286 = sand.u32 %s33, 1
        %s287 = smul.addr %s286, 256
        %s288 = scalar_lea.vmem [#allocation3], %s287
        // Predicated region
        $region49: #{tpu_custom_call.1} parent=47 // pred_check
          %p289 = pneg %p46
        $region50: #{tpu_custom_call.1} parent=47 // pred_check_branch
          %291 = sbr.rel (%p289) target = $region52
        $region51: #{tpu_custom_call.1} parent=47 // pred_region
          %292 = dma.done %s285, 4096
        $region52: #{tpu_custom_call.1} parent=47 // pred_fallthru
          _
        // Predicated region
        $region53: #{tpu_custom_call.1} parent=47 // pred_check
          %p293 = pneg %p67
        $region54: #{tpu_custom_call.1} parent=47 // pred_check_branch
          %295 = sbr.rel (%p293) target = $region56
        $region55: #{tpu_custom_call.1} parent=47 // pred_region
          %296 = dma.done [#allocation7], 3072
        $region56: #{tpu_custom_call.1} parent=47 // pred_fallthru
          _
        // Predicated region
        $region57: #{tpu_custom_call.1} parent=47 // pred_check
          %p297 = pneg %p130
        $region58: #{tpu_custom_call.1} parent=47 // pred_check_branch
          %299 = sbr.rel (%p297) target = $region60
        $region59: #{tpu_custom_call.1} parent=47 // pred_region
          %300 = dma.done [#allocation7], 3072
        $region60: #{tpu_custom_call.1} parent=47 // pred_fallthru
          _
        %s301 = sand.u32 %s33, 1
        %s302 = scalar_lea.sflag [#allocation4], %s301
        %s303 = sand.u32 %s33, 1
        %s304 = smul.addr %s303, 256
        %s305 = scalar_lea.vmem [#allocation3], %s304
        %p306 = pneg %p46
        %p307 = pneg %p43
        %p308 = pneg %p67
        %p309 = pneg %p64
        %p310 = pneg %p88
        %p311 = pneg %p85
        %p312 = pneg %p109
        %p313 = pneg %p106
        %p314 = pneg %p130
        %p315 = pneg %p127
        %p316 = pneg %p151
        %p317 = pneg %p148
        %p318 = pneg %p172
        %p319 = pneg %p169
        %p320 = pneg %p198
        %p321 = pneg %p195
        %s322 = sand.u32 %s185, 1
        %s323 = scalar_lea.sflag [#allocation5], %s322
        %s324 = sand.u32 %s185, 1
        %s325 = smul.addr %s324, 256
        %s326 = scalar_lea.vmem [#allocation9], %s325
        %s327 = smul.u32 16, %s25
        %s328 = smul.u32 16, %s25
        %330 = vst [vmem:[#allocation2] sm:$0x1] 0.0
        %331 = vst [vmem:[#allocation2 + $0x18] sm:$0x1] 0.0
        %332 = vst [vmem:[#allocation2 + $0x30] sm:$0x1] 0.0
        %333 = vst [vmem:[#allocation2 + $0x48] sm:$0x1] 0.0
        %334 = vst [vmem:[#allocation2 + $0x60] sm:$0x1] 0.0
        %335 = vst [vmem:[#allocation2 + $0x78] sm:$0x1] 0.0
        %336 = vst [vmem:[#allocation2 + $0x90] sm:$0x1] 0.0
        %337 = vst [vmem:[#allocation2 + $0xa8] sm:$0x1] 0.0
        %338 = vst [vmem:[#allocation2 + $0xc0] sm:$0x1] 0.0
        %339 = vst [vmem:[#allocation2 + $0xd8] sm:$0x1] 0.0
        %340 = vst [vmem:[#allocation2 + $0xf0] sm:$0x1] 0.0
        %341 = vst [vmem:[#allocation2 + $0x108] sm:$0x1] 0.0
        %342 = vst [vmem:[#allocation2 + $0x120] sm:$0x1] 0.0
        %343 = vst [vmem:[#allocation2 + $0x138] sm:$0x1] 0.0
        %344 = vst [vmem:[#allocation2 + $0x150] sm:$0x1] 0.0
        %345 = vst [vmem:[#allocation2 + $0x168] sm:$0x1] 0.0
        %346 = vst [vmem:[#allocation2 + $0x11] sm:$0x1] 0.0
        %347 = vst [vmem:[#allocation2 + $0x29] sm:$0x1] 0.0
        %348 = vst [vmem:[#allocation2 + $0x41] sm:$0x1] 0.0
        %349 = vst [vmem:[#allocation2 + $0x59] sm:$0x1] 0.0
        %350 = vst [vmem:[#allocation2 + $0x71] sm:$0x1] 0.0
        %351 = vst [vmem:[#allocation2 + $0x89] sm:$0x1] 0.0
        %352 = vst [vmem:[#allocation2 + $0xa1] sm:$0x1] 0.0
        %353 = vst [vmem:[#allocation2 + $0xb9] sm:$0x1] 0.0
        %354 = vst [vmem:[#allocation2 + $0xd1] sm:$0x1] 0.0
        %355 = vst [vmem:[#allocation2 + $0xe9] sm:$0x1] 0.0
        %356 = vst [vmem:[#allocation2 + $0x101] sm:$0x1] 0.0
        %357 = vst [vmem:[#allocation2 + $0x119] sm:$0x1] 0.0
        %358 = vst [vmem:[#allocation2 + $0x131] sm:$0x1] 0.0
        %359 = vst [vmem:[#allocation2 + $0x149] sm:$0x1] 0.0
        %360 = vst [vmem:[#allocation2 + $0x161] sm:$0x1] 0.0
        %361 = vst [vmem:[#allocation2 + $0x179] sm:$0x1] 0.0
        %v362 = vld [vmem:[%s288] sm:$0xff]
        %v363 = vld [vmem:[%s288 + $0x8] sm:$0xff]
        %v364 = vld [vmem:[%s288 + $0x10] sm:$0xff]
        %v365 = vld [vmem:[%s288 + $0x18] sm:$0xff]
        %v366 = vld [vmem:[%s288 + $0x20] sm:$0xff]
        %v367 = vld [vmem:[%s288 + $0x28] sm:$0xff]
        %v368 = vld [vmem:[%s288 + $0x30] sm:$0xff]
        %v369 = vld [vmem:[%s288 + $0x38] sm:$0xff]
        %v370 = vld [vmem:[%s288 + $0x40] sm:$0xff]
        %v371 = vld [vmem:[%s288 + $0x48] sm:$0xff]
        %v372 = vld [vmem:[%s288 + $0x50] sm:$0xff]
        %v373 = vld [vmem:[%s288 + $0x58] sm:$0xff]
        %v374 = vld [vmem:[%s288 + $0x60] sm:$0xff]
        %v375 = vld [vmem:[%s288 + $0x68] sm:$0xff]
        %v376 = vld [vmem:[%s288 + $0x70] sm:$0xff]
        %v377 = vld [vmem:[%s288 + $0x78] sm:$0xff]
        %v378 = vld [vmem:[%s288 + $0x80] sm:$0xff]
        %v379 = vld [vmem:[%s288 + $0x88] sm:$0xff]
        %v380 = vld [vmem:[%s288 + $0x90] sm:$0xff]
        %v381 = vld [vmem:[%s288 + $0x98] sm:$0xff]
        %v382 = vld [vmem:[%s288 + $0xa0] sm:$0xff]
        %v383 = vld [vmem:[%s288 + $0xa8] sm:$0xff]
        %v384 = vld [vmem:[%s288 + $0xb0] sm:$0xff]
        %v385 = vld [vmem:[%s288 + $0xb8] sm:$0xff]
        %v386 = vld [vmem:[%s288 + $0xc0] sm:$0xff]
        %v387 = vld [vmem:[%s288 + $0xc8] sm:$0xff]
        %v388 = vld [vmem:[%s288 + $0xd0] sm:$0xff]
        %v389 = vld [vmem:[%s288 + $0xd8] sm:$0xff]
        %v390 = vld [vmem:[%s288 + $0xe0] sm:$0xff]
        %v391 = vld [vmem:[%s288 + $0xe8] sm:$0xff]
        %v392 = vld [vmem:[%s288 + $0xf0] sm:$0xff]
        %v393 = vld [vmem:[%s288 + $0xf8] sm:$0xff]
        %394 = vst [vmem:[#allocation2 + $0x1] sm:$0xff] %v362
        %395 = vst [vmem:[#allocation2 + $0x9] sm:$0xff] %v363
        %396 = vst [vmem:[#allocation2 + $0x19] sm:$0xff] %v364
        %397 = vst [vmem:[#allocation2 + $0x21] sm:$0xff] %v365
        %398 = vst [vmem:[#allocation2 + $0x31] sm:$0xff] %v366
        %399 = vst [vmem:[#allocation2 + $0x39] sm:$0xff] %v367
        %400 = vst [vmem:[#allocation2 + $0x49] sm:$0xff] %v368
        %401 = vst [vmem:[#allocation2 + $0x51] sm:$0xff] %v369
        %402 = vst [vmem:[#allocation2 + $0x61] sm:$0xff] %v370
        %403 = vst [vmem:[#allocation2 + $0x69] sm:$0xff] %v371
        %404 = vst [vmem:[#allocation2 + $0x79] sm:$0xff] %v372
        %405 = vst [vmem:[#allocation2 + $0x81] sm:$0xff] %v373
        %406 = vst [vmem:[#allocation2 + $0x91] sm:$0xff] %v374
        %407 = vst [vmem:[#allocation2 + $0x99] sm:$0xff] %v375
        %408 = vst [vmem:[#allocation2 + $0xa9] sm:$0xff] %v376
        %409 = vst [vmem:[#allocation2 + $0xb1] sm:$0xff] %v377
        %410 = vst [vmem:[#allocation2 + $0xc1] sm:$0xff] %v378
        %411 = vst [vmem:[#allocation2 + $0xc9] sm:$0xff] %v379
        %412 = vst [vmem:[#allocation2 + $0xd9] sm:$0xff] %v380
        %413 = vst [vmem:[#allocation2 + $0xe1] sm:$0xff] %v381
        %414 = vst [vmem:[#allocation2 + $0xf1] sm:$0xff] %v382
        %415 = vst [vmem:[#allocation2 + $0xf9] sm:$0xff] %v383
        %416 = vst [vmem:[#allocation2 + $0x109] sm:$0xff] %v384
        %417 = vst [vmem:[#allocation2 + $0x111] sm:$0xff] %v385
        %418 = vst [vmem:[#allocation2 + $0x121] sm:$0xff] %v386
        %419 = vst [vmem:[#allocation2 + $0x129] sm:$0xff] %v387
        %420 = vst [vmem:[#allocation2 + $0x139] sm:$0xff] %v388
        %421 = vst [vmem:[#allocation2 + $0x141] sm:$0xff] %v389
        %422 = vst [vmem:[#allocation2 + $0x151] sm:$0xff] %v390
        %423 = vst [vmem:[#allocation2 + $0x159] sm:$0xff] %v391
        %424 = vst [vmem:[#allocation2 + $0x169] sm:$0xff] %v392
        %425 = vst [vmem:[#allocation2 + $0x171] sm:$0xff] %v393
        %v426 = vld [vmem:[#allocation2 + $0x1] sm:$0xff]
        %v427 = vld [vmem:[#allocation2 + $0x9] sm:$0xff]
        %v428 = vld [vmem:[#allocation2 + $0x19] sm:$0xff]
        %v429 = vld [vmem:[#allocation2 + $0x21] sm:$0xff]
        %v430 = vld [vmem:[#allocation2 + $0x31] sm:$0xff]
        %v431 = vld [vmem:[#allocation2 + $0x39] sm:$0xff]
        %v432 = vld [vmem:[#allocation2 + $0x49] sm:$0xff]
        %v433 = vld [vmem:[#allocation2 + $0x51] sm:$0xff]
        %v434 = vld [vmem:[#allocation2 + $0x61] sm:$0xff]
        %v435 = vld [vmem:[#allocation2 + $0x69] sm:$0xff]
        %v436 = vld [vmem:[#allocation2 + $0x79] sm:$0xff]
        %v437 = vld [vmem:[#allocation2 + $0x81] sm:$0xff]
        %v438 = vld [vmem:[#allocation2 + $0x91] sm:$0xff]
        %v439 = vld [vmem:[#allocation2 + $0x99] sm:$0xff]
        %v440 = vld [vmem:[#allocation2 + $0xa9] sm:$0xff]
        %v441 = vld [vmem:[#allocation2 + $0xb1] sm:$0xff]
        %v442 = vld [vmem:[#allocation2 + $0xc1] sm:$0xff]
        %v443 = vld [vmem:[#allocation2 + $0xc9] sm:$0xff]
        %v444 = vld [vmem:[#allocation2 + $0xd9] sm:$0xff]
        %v445 = vld [vmem:[#allocation2 + $0xe1] sm:$0xff]
        %v446 = vld [vmem:[#allocation2 + $0xf1] sm:$0xff]
        %v447 = vld [vmem:[#allocation2 + $0xf9] sm:$0xff]
        %v448 = vld [vmem:[#allocation2 + $0x109] sm:$0xff]
        %v449 = vld [vmem:[#allocation2 + $0x111] sm:$0xff]
        %v450 = vld [vmem:[#allocation2 + $0x121] sm:$0xff]
        %v451 = vld [vmem:[#allocation2 + $0x129] sm:$0xff]
        %v452 = vld [vmem:[#allocation2 + $0x139] sm:$0xff]
        %v453 = vld [vmem:[#allocation2 + $0x141] sm:$0xff]
        %v454 = vld [vmem:[#allocation2 + $0x151] sm:$0xff]
        %v455 = vld [vmem:[#allocation2 + $0x159] sm:$0xff]
        %v456 = vld [vmem:[#allocation2 + $0x169] sm:$0xff]
        %v457 = vld [vmem:[#allocation2 + $0x171] sm:$0xff]
        %v458 = vpack.c.bf16 %v427, %v426
        %v459 = vpack.c.bf16 %v429, %v428
        %v460 = vpack.c.bf16 %v431, %v430
        %v461 = vpack.c.bf16 %v433, %v432
        %v462 = vpack.c.bf16 %v435, %v434
        %v463 = vpack.c.bf16 %v437, %v436
        %v464 = vpack.c.bf16 %v439, %v438
        %v465 = vpack.c.bf16 %v441, %v440
        %v466 = vpack.c.bf16 %v443, %v442
        %v467 = vpack.c.bf16 %v445, %v444
        %v468 = vpack.c.bf16 %v447, %v446
        %v469 = vpack.c.bf16 %v449, %v448
        %v470 = vpack.c.bf16 %v451, %v450
        %v471 = vpack.c.bf16 %v453, %v452
        %v472 = vpack.c.bf16 %v455, %v454
        %v473 = vpack.c.bf16 %v457, %v456
        %s474 = scalar_lea.vmem [#allocation6], 64
        %v475 = vld [vmem:[%s474] sm:$0xf]
        %v476 = vld [vmem:[%s474 + $0x4] sm:$0xf]
        %v477 = vld [vmem:[%s474 + $0x8] sm:$0xf]
        %v478 = vld [vmem:[%s474 + $0xc] sm:$0xf]
        %v479 = vld [vmem:[%s474 + $0x10] sm:$0xf]
        %v480 = vld [vmem:[%s474 + $0x14] sm:$0xf]
        %v481 = vld [vmem:[%s474 + $0x18] sm:$0xf]
        %v482 = vld [vmem:[%s474 + $0x1c] sm:$0xf]
        %v483 = vld [vmem:[%s474 + $0x20] sm:$0xf]
        %v484 = vld [vmem:[%s474 + $0x24] sm:$0xf]
        %v485 = vld [vmem:[%s474 + $0x28] sm:$0xf]
        %v486 = vld [vmem:[%s474 + $0x2c] sm:$0xf]
        %v487 = vld [vmem:[%s474 + $0x30] sm:$0xf]
        %v488 = vld [vmem:[%s474 + $0x34] sm:$0xf]
        %v489 = vld [vmem:[%s474 + $0x38] sm:$0xf]
        %v490 = vld [vmem:[%s474 + $0x3c] sm:$0xf]
        %v491 = vld [vmem:[#allocation2] sm:$0xff]
        %v492 = vld [vmem:[#allocation2 + $0x8] sm:$0xff]
        %v493 = vld [vmem:[#allocation2 + $0x18] sm:$0xff]
        %v494 = vld [vmem:[#allocation2 + $0x20] sm:$0xff]
        %v495 = vld [vmem:[#allocation2 + $0x30] sm:$0xff]
        %v496 = vld [vmem:[#allocation2 + $0x38] sm:$0xff]
        %v497 = vld [vmem:[#allocation2 + $0x48] sm:$0xff]
        %v498 = vld [vmem:[#allocation2 + $0x50] sm:$0xff]
        %v499 = vld [vmem:[#allocation2 + $0x60] sm:$0xff]
        %v500 = vld [vmem:[#allocation2 + $0x68] sm:$0xff]
        %v501 = vld [vmem:[#allocation2 + $0x78] sm:$0xff]
        %v502 = vld [vmem:[#allocation2 + $0x80] sm:$0xff]
        %v503 = vld [vmem:[#allocation2 + $0x90] sm:$0xff]
        %v504 = vld [vmem:[#allocation2 + $0x98] sm:$0xff]
        %v505 = vld [vmem:[#allocation2 + $0xa8] sm:$0xff]
        %v506 = vld [vmem:[#allocation2 + $0xb0] sm:$0xff]
        %v507 = vld [vmem:[#allocation2 + $0xc0] sm:$0xff]
        %v508 = vld [vmem:[#allocation2 + $0xc8] sm:$0xff]
        %v509 = vld [vmem:[#allocation2 + $0xd8] sm:$0xff]
        %v510 = vld [vmem:[#allocation2 + $0xe0] sm:$0xff]
        %v511 = vld [vmem:[#allocation2 + $0xf0] sm:$0xff]
        %v512 = vld [vmem:[#allocation2 + $0xf8] sm:$0xff]
        %v513 = vld [vmem:[#allocation2 + $0x108] sm:$0xff]
        %v514 = vld [vmem:[#allocation2 + $0x110] sm:$0xff]
        %v515 = vld [vmem:[#allocation2 + $0x120] sm:$0xff]
        %v516 = vld [vmem:[#allocation2 + $0x128] sm:$0xff]
        %v517 = vld [vmem:[#allocation2 + $0x138] sm:$0xff]
        %v518 = vld [vmem:[#allocation2 + $0x140] sm:$0xff]
        %v519 = vld [vmem:[#allocation2 + $0x150] sm:$0xff]
        %v520 = vld [vmem:[#allocation2 + $0x158] sm:$0xff]
        %v521 = vld [vmem:[#allocation2 + $0x168] sm:$0xff]
        %v522 = vld [vmem:[#allocation2 + $0x170] sm:$0xff]
        %v523 = vpack.c.bf16 %v492, %v491
        %v524 = vpack.c.bf16 %v494, %v493
        %v525 = vpack.c.bf16 %v496, %v495
        %v526 = vpack.c.bf16 %v498, %v497
        %v527 = vpack.c.bf16 %v500, %v499
        %v528 = vpack.c.bf16 %v502, %v501
        %v529 = vpack.c.bf16 %v504, %v503
        %v530 = vpack.c.bf16 %v506, %v505
        %v531 = vpack.c.bf16 %v508, %v507
        %v532 = vpack.c.bf16 %v510, %v509
        %v533 = vpack.c.bf16 %v512, %v511
        %v534 = vpack.c.bf16 %v514, %v513
        %v535 = vpack.c.bf16 %v516, %v515
        %v536 = vpack.c.bf16 %v518, %v517
        %v537 = vpack.c.bf16 %v520, %v519
        %v538 = vpack.c.bf16 %v522, %v521
        %v539 = vld [vmem:[#allocation6] sm:$0xf]
        %v540 = vld [vmem:[#allocation6 + $0x4] sm:$0xf]
        %v541 = vld [vmem:[#allocation6 + $0x8] sm:$0xf]
        %v542 = vld [vmem:[#allocation6 + $0xc] sm:$0xf]
        %v543 = vld [vmem:[#allocation6 + $0x10] sm:$0xf]
        %v544 = vld [vmem:[#allocation6 + $0x14] sm:$0xf]
        %v545 = vld [vmem:[#allocation6 + $0x18] sm:$0xf]
        %v546 = vld [vmem:[#allocation6 + $0x1c] sm:$0xf]
        %v547 = vld [vmem:[#allocation6 + $0x20] sm:$0xf]
        %v548 = vld [vmem:[#allocation6 + $0x24] sm:$0xf]
        %v549 = vld [vmem:[#allocation6 + $0x28] sm:$0xf]
        %v550 = vld [vmem:[#allocation6 + $0x2c] sm:$0xf]
        %v551 = vld [vmem:[#allocation6 + $0x30] sm:$0xf]
        %v552 = vld [vmem:[#allocation6 + $0x34] sm:$0xf]
        %v553 = vld [vmem:[#allocation6 + $0x38] sm:$0xf]
        %v554 = vld [vmem:[#allocation6 + $0x3c] sm:$0xf]
        %v571 = vunpack.c.l.b16 %v539
        %v572 = vunpack.c.l.b16 %v540
        %v573 = vunpack.c.l.b16 %v541
        %v574 = vunpack.c.l.b16 %v542
        %v575 = vunpack.c.l.b16 %v543
        %v576 = vunpack.c.l.b16 %v544
        %v577 = vunpack.c.l.b16 %v545
        %v578 = vunpack.c.l.b16 %v546
        %v579 = vunpack.c.l.b16 %v547
        %v580 = vunpack.c.l.b16 %v548
        %v581 = vunpack.c.l.b16 %v549
        %v582 = vunpack.c.l.b16 %v550
        %v583 = vunpack.c.l.b16 %v551
        %v584 = vunpack.c.l.b16 %v552
        %v585 = vunpack.c.l.b16 %v553
        %v586 = vunpack.c.l.b16 %v554
        %v587 = vpack.c.b16 %v572, %v571
        %v588 = vpack.c.b16 %v574, %v573
        %v589 = vpack.c.b16 %v576, %v575
        %v590 = vpack.c.b16 %v578, %v577
        %v591 = vpack.c.b16 %v580, %v579
        %v592 = vpack.c.b16 %v582, %v581
        %v593 = vpack.c.b16 %v584, %v583
        %v594 = vpack.c.b16 %v586, %v585
        %603 = vmatprep.subr.bf16.mxu0 0
        %604 = vmatpush1.bf16.msra.mxu0 %v587
        %605 = vmatprep.subr.bf16.mxu0 0
        %606 = vmatpush1.bf16.msra.mxu0 %v588
        %607 = vmatprep.subr.bf16.mxu0 0
        %608 = vmatpush1.bf16.msra.mxu0 %v589
        %609 = vmatprep.subr.bf16.mxu0 0
        %610 = vmatpush1.bf16.msra.mxu0 %v590
        %611 = vmatprep.subr.bf16.mxu0 0
        %612 = vmatpush1.bf16.msra.mxu0 %v591
        %613 = vmatprep.subr.bf16.mxu0 0
        %614 = vmatpush1.bf16.msra.mxu0 %v592
        %615 = vmatprep.subr.bf16.mxu0 0
        %616 = vmatpush1.bf16.msra.mxu0 %v593
        %617 = vmatprep.subr.bf16.mxu0 0
        %618 = vmatpush1.bf16.msra.mxu0 %v594
        %619 = vmatprep.subr.bf16.mxu0 0
        %620 = vmatpush1.bf16.msra.mxu0 0
        %621 = vmatprep.subr.bf16.mxu0 0
        %622 = vmatpush1.bf16.msra.mxu0 0
        %623 = vmatprep.subr.bf16.mxu0 0
        %624 = vmatpush1.bf16.msra.mxu0 0
        %625 = vmatprep.subr.bf16.mxu0 0
        %626 = vmatpush1.bf16.msra.mxu0 0
        %627 = vmatprep.subr.bf16.mxu0 0
        %628 = vmatpush1.bf16.msra.mxu0 0
        %629 = vmatprep.subr.bf16.mxu0 0
        %630 = vmatpush1.bf16.msra.mxu0 0
        %631 = vmatprep.subr.bf16.mxu0 0
        %632 = vmatpush1.bf16.msra.mxu0 0
        %633 = vmatprep.subr.bf16.mxu0 0
        %634 = vmatpush1.bf16.msra.mxu0 0
        %635 = vmatprep.mubr.bf16.mxu0 0
        %636 = vmatmul.mubr.bf16.gmra.mrb[0].mxu0 %v523
        %v637 = vpop.f32.mrb[0].mxu0
        %v638 = vadd.f32 0.0, %v637
        %v639 = vpop.f32.mrb[0].mxu0
        %v640 = vpop.f32.mrb[0].mxu0
        %v641 = vadd.f32 0.0, %v640
        %v642 = vpop.f32.mrb[0].mxu0
        %643 = vmatprep.mubr.bf16.mxu0 0
        %644 = vmatmul.mubr.bf16.gmra.mrb[0].mxu0 %v524
        %v645 = vpop.f32.mrb[0].mxu0
        %v646 = vadd.f32 0.0, %v645
        %v647 = vpop.f32.mrb[0].mxu0
        %v648 = vpop.f32.mrb[0].mxu0
        %v649 = vadd.f32 0.0, %v648
        %v650 = vpop.f32.mrb[0].mxu0
        %651 = vmatprep.mubr.bf16.mxu0 0
        %652 = vmatmul.mubr.bf16.gmra.mrb[0].mxu0 %v525
        %v653 = vpop.f32.mrb[0].mxu0
        %v654 = vadd.f32 0.0, %v653
        %v655 = vpop.f32.mrb[0].mxu0
        %v656 = vpop.f32.mrb[0].mxu0
        %v657 = vadd.f32 0.0, %v656
        %v658 = vpop.f32.mrb[0].mxu0
        %659 = vmatprep.mubr.bf16.mxu0 0
        %660 = vmatmul.mubr.bf16.gmra.mrb[0].mxu0 %v526
        %v661 = vpop.f32.mrb[0].mxu0
        %v662 = vadd.f32 0.0, %v661
        %v663 = vpop.f32.mrb[0].mxu0
        %v664 = vpop.f32.mrb[0].mxu0
        %v665 = vadd.f32 0.0, %v664
        %v666 = vpop.f32.mrb[0].mxu0
        %667 = vmatprep.mubr.bf16.mxu0 0
        %668 = vmatmul.mubr.bf16.gmra.mrb[0].mxu0 %v527
        %v669 = vpop.f32.mrb[0].mxu0
        %v670 = vadd.f32 0.0, %v669
        %v671 = vpop.f32.mrb[0].mxu0
        %v672 = vpop.f32.mrb[0].mxu0
        %v673 = vadd.f32 0.0, %v672
        %v674 = vpop.f32.mrb[0].mxu0
        %675 = vmatprep.mubr.bf16.mxu0 0
        %676 = vmatmul.mubr.bf16.gmra.mrb[0].mxu0 %v528
        %v677 = vpop.f32.mrb[0].mxu0
        %v678 = vadd.f32 0.0, %v677
        %v679 = vpop.f32.mrb[0].mxu0
        %v680 = vpop.f32.mrb[0].mxu0
        %v681 = vadd.f32 0.0, %v680
        %v682 = vpop.f32.mrb[0].mxu0
        %683 = vmatprep.mubr.bf16.mxu0 0
        %684 = vmatmul.mubr.bf16.gmra.mrb[0].mxu0 %v529
        %v685 = vpop.f32.mrb[0].mxu0
        %v686 = vadd.f32 0.0, %v685
        %v687 = vpop.f32.mrb[0].mxu0
        %v688 = vpop.f32.mrb[0].mxu0
        %v689 = vadd.f32 0.0, %v688
        %v690 = vpop.f32.mrb[0].mxu0
        %691 = vmatprep.mubr.bf16.mxu0 0
        %692 = vmatmul.mubr.bf16.gmra.mrb[0].mxu0 %v530
        %v693 = vpop.f32.mrb[0].mxu0
        %v694 = vadd.f32 0.0, %v693
        %v695 = vpop.f32.mrb[0].mxu0
        %v696 = vpop.f32.mrb[0].mxu0
        %v697 = vadd.f32 0.0, %v696
        %v698 = vpop.f32.mrb[0].mxu0
        %699 = vmatprep.mubr.bf16.mxu0 0
        %700 = vmatmul.mubr.bf16.gmra.mrb[0].mxu0 %v531
        %v701 = vpop.f32.mrb[0].mxu0
        %v702 = vadd.f32 0.0, %v701
        %v703 = vpop.f32.mrb[0].mxu0
        %v704 = vpop.f32.mrb[0].mxu0
        %v705 = vadd.f32 0.0, %v704
        %v706 = vpop.f32.mrb[0].mxu0
        %707 = vmatprep.mubr.bf16.mxu0 0
        %708 = vmatmul.mubr.bf16.gmra.mrb[0].mxu0 %v532
        %v709 = vpop.f32.mrb[0].mxu0
        %v710 = vadd.f32 0.0, %v709
        %v711 = vpop.f32.mrb[0].mxu0
        %v712 = vpop.f32.mrb[0].mxu0
        %v713 = vadd.f32 0.0, %v712
        %v714 = vpop.f32.mrb[0].mxu0
        %715 = vmatprep.mubr.bf16.mxu0 0
        %716 = vmatmul.mubr.bf16.gmra.mrb[0].mxu0 %v533
        %v717 = vpop.f32.mrb[0].mxu0
        %v718 = vadd.f32 0.0, %v717
        %v719 = vpop.f32.mrb[0].mxu0
        %v720 = vpop.f32.mrb[0].mxu0
        %v721 = vadd.f32 0.0, %v720
        %v722 = vpop.f32.mrb[0].mxu0
        %723 = vmatprep.mubr.bf16.mxu0 0
        %724 = vmatmul.mubr.bf16.gmra.mrb[0].mxu0 %v534
        %v725 = vpop.f32.mrb[0].mxu0
        %v726 = vadd.f32 0.0, %v725
        %v727 = vpop.f32.mrb[0].mxu0
        %v728 = vpop.f32.mrb[0].mxu0
        %v729 = vadd.f32 0.0, %v728
        %v730 = vpop.f32.mrb[0].mxu0
        %731 = vmatprep.mubr.bf16.mxu0 0
        %732 = vmatmul.mubr.bf16.gmra.mrb[0].mxu0 %v535
        %v733 = vpop.f32.mrb[0].mxu0
        %v734 = vadd.f32 0.0, %v733
        %v735 = vpop.f32.mrb[0].mxu0
        %v736 = vpop.f32.mrb[0].mxu0
        %v737 = vadd.f32 0.0, %v736
        %v738 = vpop.f32.mrb[0].mxu0
        %739 = vmatprep.mubr.bf16.mxu0 0
        %740 = vmatmul.mubr.bf16.gmra.mrb[0].mxu0 %v536
        %v741 = vpop.f32.mrb[0].mxu0
        %v742 = vadd.f32 0.0, %v741
        %v743 = vpop.f32.mrb[0].mxu0
        %v744 = vpop.f32.mrb[0].mxu0
        %v745 = vadd.f32 0.0, %v744
        %v746 = vpop.f32.mrb[0].mxu0
        %747 = vmatprep.mubr.bf16.mxu0 0
        %748 = vmatmul.mubr.bf16.gmra.mrb[0].mxu0 %v537
        %v749 = vpop.f32.mrb[0].mxu0
        %v750 = vadd.f32 0.0, %v749
        %v751 = vpop.f32.mrb[0].mxu0
        %v752 = vpop.f32.mrb[0].mxu0
        %v753 = vadd.f32 0.0, %v752
        %v754 = vpop.f32.mrb[0].mxu0
        %755 = vmatprep.mubr.bf16.mxu0 0
        %756 = vmatmul.mubr.bf16.gmra.mrb[0].mxu0 %v538
        %v757 = vpop.f32.mrb[0].mxu0
        %v758 = vadd.f32 0.0, %v757
        %v759 = vpop.f32.mrb[0].mxu0
        %v760 = vpop.f32.mrb[0].mxu0
        %v761 = vadd.f32 0.0, %v760
        %v762 = vpop.f32.mrb[0].mxu0
        %763 = vdwg.mxu0
        %v780 = vunpack.c.l.b16 %v475
        %v781 = vunpack.c.l.b16 %v476
        %v782 = vunpack.c.l.b16 %v477
        %v783 = vunpack.c.l.b16 %v478
        %v784 = vunpack.c.l.b16 %v479
        %v785 = vunpack.c.l.b16 %v480
        %v786 = vunpack.c.l.b16 %v481
        %v787 = vunpack.c.l.b16 %v482
        %v788 = vunpack.c.l.b16 %v483
        %v789 = vunpack.c.l.b16 %v484
        %v790 = vunpack.c.l.b16 %v485
        %v791 = vunpack.c.l.b16 %v486
        %v792 = vunpack.c.l.b16 %v487
        %v793 = vunpack.c.l.b16 %v488
        %v794 = vunpack.c.l.b16 %v489
        %v795 = vunpack.c.l.b16 %v490
        %v796 = vpack.c.b16 %v781, %v780
        %v797 = vpack.c.b16 %v783, %v782
        %v798 = vpack.c.b16 %v785, %v784
        %v799 = vpack.c.b16 %v787, %v786
        %v800 = vpack.c.b16 %v789, %v788
        %v801 = vpack.c.b16 %v791, %v790
        %v802 = vpack.c.b16 %v793, %v792
        %v803 = vpack.c.b16 %v795, %v794
        %812 = vmatprep.subr.bf16.mxu0 0
        %813 = vmatpush1.bf16.msra.mxu0 %v796
        %814 = vmatprep.subr.bf16.mxu0 0
        %815 = vmatpush1.bf16.msra.mxu0 %v797
        %816 = vmatprep.subr.bf16.mxu0 0
        %817 = vmatpush1.bf16.msra.mxu0 %v798
        %818 = vmatprep.subr.bf16.mxu0 0
        %819 = vmatpush1.bf16.msra.mxu0 %v799
        %820 = vmatprep.subr.bf16.mxu0 0
        %821 = vmatpush1.bf16.msra.mxu0 %v800
        %822 = vmatprep.subr.bf16.mxu0 0
        %823 = vmatpush1.bf16.msra.mxu0 %v801
        %824 = vmatprep.subr.bf16.mxu0 0
        %825 = vmatpush1.bf16.msra.mxu0 %v802
        %826 = vmatprep.subr.bf16.mxu0 0
        %827 = vmatpush1.bf16.msra.mxu0 %v803
        %828 = vmatprep.subr.bf16.mxu0 0
        %829 = vmatpush1.bf16.msra.mxu0 0
        %830 = vmatprep.subr.bf16.mxu0 0
        %831 = vmatpush1.bf16.msra.mxu0 0
        %832 = vmatprep.subr.bf16.mxu0 0
        %833 = vmatpush1.bf16.msra.mxu0 0
        %834 = vmatprep.subr.bf16.mxu0 0
        %835 = vmatpush1.bf16.msra.mxu0 0
        %836 = vmatprep.subr.bf16.mxu0 0
        %837 = vmatpush1.bf16.msra.mxu0 0
        %838 = vmatprep.subr.bf16.mxu0 0
        %839 = vmatpush1.bf16.msra.mxu0 0
        %840 = vmatprep.subr.bf16.mxu0 0
        %841 = vmatpush1.bf16.msra.mxu0 0
        %842 = vmatprep.subr.bf16.mxu0 0
        %843 = vmatpush1.bf16.msra.mxu0 0
        %844 = vmatprep.mubr.bf16.mxu0 0
        %845 = vmatmul.mubr.bf16.gmra.mrb[0].mxu0 %v458
        %v846 = vpop.f32.mrb[0].mxu0
        %v847 = vadd.f32 %v638, %v846
        %v848 = vpop.f32.mrb[0].mxu0
        %v849 = vpop.f32.mrb[0].mxu0
        %v850 = vadd.f32 %v641, %v849
        %v851 = vpop.f32.mrb[0].mxu0
        %852 = vmatprep.mubr.bf16.mxu0 0
        %853 = vmatmul.mubr.bf16.gmra.mrb[0].mxu0 %v459
        %v854 = vpop.f32.mrb[0].mxu0
        %v855 = vadd.f32 %v646, %v854
        %v856 = vpop.f32.mrb[0].mxu0
        %v857 = vpop.f32.mrb[0].mxu0
        %v858 = vadd.f32 %v649, %v857
        %v859 = vpop.f32.mrb[0].mxu0
        %860 = vmatprep.mubr.bf16.mxu0 0
        %861 = vmatmul.mubr.bf16.gmra.mrb[0].mxu0 %v460
        %v862 = vpop.f32.mrb[0].mxu0
        %v863 = vadd.f32 %v654, %v862
        %v864 = vpop.f32.mrb[0].mxu0
        %v865 = vpop.f32.mrb[0].mxu0
        %v866 = vadd.f32 %v657, %v865
        %v867 = vpop.f32.mrb[0].mxu0
        %868 = vmatprep.mubr.bf16.mxu0 0
        %869 = vmatmul.mubr.bf16.gmra.mrb[0].mxu0 %v461
        %v870 = vpop.f32.mrb[0].mxu0
        %v871 = vadd.f32 %v662, %v870
        %v872 = vpop.f32.mrb[0].mxu0
        %v873 = vpop.f32.mrb[0].mxu0
        %v874 = vadd.f32 %v665, %v873
        %v875 = vpop.f32.mrb[0].mxu0
        %876 = vmatprep.mubr.bf16.mxu0 0
        %877 = vmatmul.mubr.bf16.gmra.mrb[0].mxu0 %v462
        %v878 = vpop.f32.mrb[0].mxu0
        %v879 = vadd.f32 %v670, %v878
        %v880 = vpop.f32.mrb[0].mxu0
        %v881 = vpop.f32.mrb[0].mxu0
        %v882 = vadd.f32 %v673, %v881
        %v883 = vpop.f32.mrb[0].mxu0
        %884 = vmatprep.mubr.bf16.mxu0 0
        %885 = vmatmul.mubr.bf16.gmra.mrb[0].mxu0 %v463
        %v886 = vpop.f32.mrb[0].mxu0
        %v887 = vadd.f32 %v678, %v886
        %v888 = vpop.f32.mrb[0].mxu0
        %v889 = vpop.f32.mrb[0].mxu0
        %v890 = vadd.f32 %v681, %v889
        %v891 = vpop.f32.mrb[0].mxu0
        %892 = vmatprep.mubr.bf16.mxu0 0
        %893 = vmatmul.mubr.bf16.gmra.mrb[0].mxu0 %v464
        %v894 = vpop.f32.mrb[0].mxu0
        %v895 = vadd.f32 %v686, %v894
        %v896 = vpop.f32.mrb[0].mxu0
        %v897 = vpop.f32.mrb[0].mxu0
        %v898 = vadd.f32 %v689, %v897
        %v899 = vpop.f32.mrb[0].mxu0
        %900 = vmatprep.mubr.bf16.mxu0 0
        %901 = vmatmul.mubr.bf16.gmra.mrb[0].mxu0 %v465
        %v902 = vpop.f32.mrb[0].mxu0
        %v903 = vadd.f32 %v694, %v902
        %v904 = vpop.f32.mrb[0].mxu0
        %v905 = vpop.f32.mrb[0].mxu0
        %v906 = vadd.f32 %v697, %v905
        %v907 = vpop.f32.mrb[0].mxu0
        %908 = vmatprep.mubr.bf16.mxu0 0
        %909 = vmatmul.mubr.bf16.gmra.mrb[0].mxu0 %v466
        %v910 = vpop.f32.mrb[0].mxu0
        %v911 = vadd.f32 %v702, %v910
        %v912 = vpop.f32.mrb[0].mxu0
        %v913 = vpop.f32.mrb[0].mxu0
        %v914 = vadd.f32 %v705, %v913
        %v915 = vpop.f32.mrb[0].mxu0
        %916 = vmatprep.mubr.bf16.mxu0 0
        %917 = vmatmul.mubr.bf16.gmra.mrb[0].mxu0 %v467
        %v918 = vpop.f32.mrb[0].mxu0
        %v919 = vadd.f32 %v710, %v918
        %v920 = vpop.f32.mrb[0].mxu0
        %v921 = vpop.f32.mrb[0].mxu0
        %v922 = vadd.f32 %v713, %v921
        %v923 = vpop.f32.mrb[0].mxu0
        %924 = vmatprep.mubr.bf16.mxu0 0
        %925 = vmatmul.mubr.bf16.gmra.mrb[0].mxu0 %v468
        %v926 = vpop.f32.mrb[0].mxu0
        %v927 = vadd.f32 %v718, %v926
        %v928 = vpop.f32.mrb[0].mxu0
        %v929 = vpop.f32.mrb[0].mxu0
        %v930 = vadd.f32 %v721, %v929
        %v931 = vpop.f32.mrb[0].mxu0
        %932 = vmatprep.mubr.bf16.mxu0 0
        %933 = vmatmul.mubr.bf16.gmra.mrb[0].mxu0 %v469
        %v934 = vpop.f32.mrb[0].mxu0
        %v935 = vadd.f32 %v726, %v934
        %v936 = vpop.f32.mrb[0].mxu0
        %v937 = vpop.f32.mrb[0].mxu0
        %v938 = vadd.f32 %v729, %v937
        %v939 = vpop.f32.mrb[0].mxu0
        %940 = vmatprep.mubr.bf16.mxu0 0
        %941 = vmatmul.mubr.bf16.gmra.mrb[0].mxu0 %v470
        %v942 = vpop.f32.mrb[0].mxu0
        %v943 = vadd.f32 %v734, %v942
        %v944 = vpop.f32.mrb[0].mxu0
        %v945 = vpop.f32.mrb[0].mxu0
        %v946 = vadd.f32 %v737, %v945
        %v947 = vpop.f32.mrb[0].mxu0
        %948 = vmatprep.mubr.bf16.mxu0 0
        %949 = vmatmul.mubr.bf16.gmra.mrb[0].mxu0 %v471
        %v950 = vpop.f32.mrb[0].mxu0
        %v951 = vadd.f32 %v742, %v950
        %v952 = vpop.f32.mrb[0].mxu0
        %v953 = vpop.f32.mrb[0].mxu0
        %v954 = vadd.f32 %v745, %v953
        %v955 = vpop.f32.mrb[0].mxu0
        %956 = vmatprep.mubr.bf16.mxu0 0
        %957 = vmatmul.mubr.bf16.gmra.mrb[0].mxu0 %v472
        %v958 = vpop.f32.mrb[0].mxu0
        %v959 = vadd.f32 %v750, %v958
        %v960 = vpop.f32.mrb[0].mxu0
        %v961 = vpop.f32.mrb[0].mxu0
        %v962 = vadd.f32 %v753, %v961
        %v963 = vpop.f32.mrb[0].mxu0
        %964 = vmatprep.mubr.bf16.mxu0 0
        %965 = vmatmul.mubr.bf16.gmra.mrb[0].mxu0 %v473
        %v966 = vpop.f32.mrb[0].mxu0
        %v967 = vadd.f32 %v758, %v966
        %v968 = vpop.f32.mrb[0].mxu0
        %v969 = vpop.f32.mrb[0].mxu0
        %v970 = vadd.f32 %v761, %v969
        %v971 = vpop.f32.mrb[0].mxu0
        %972 = vdwg.mxu0
        %v973 = vld [vmem:[#allocation2 + $0x2] sm:$0xff]
        %v974 = vld [vmem:[#allocation2 + $0xa] sm:$0xff]
        %v975 = vld [vmem:[#allocation2 + $0x1a] sm:$0xff]
        %v976 = vld [vmem:[#allocation2 + $0x22] sm:$0xff]
        %v977 = vld [vmem:[#allocation2 + $0x32] sm:$0xff]
        %v978 = vld [vmem:[#allocation2 + $0x3a] sm:$0xff]
        %v979 = vld [vmem:[#allocation2 + $0x4a] sm:$0xff]
        %v980 = vld [vmem:[#allocation2 + $0x52] sm:$0xff]
        %v981 = vld [vmem:[#allocation2 + $0x62] sm:$0xff]
        %v982 = vld [vmem:[#allocation2 + $0x6a] sm:$0xff]
        %v983 = vld [vmem:[#allocation2 + $0x7a] sm:$0xff]
        %v984 = vld [vmem:[#allocation2 + $0x82] sm:$0xff]
        %v985 = vld [vmem:[#allocation2 + $0x92] sm:$0xff]
        %v986 = vld [vmem:[#allocation2 + $0x9a] sm:$0xff]
        %v987 = vld [vmem:[#allocation2 + $0xaa] sm:$0xff]
        %v988 = vld [vmem:[#allocation2 + $0xb2] sm:$0xff]
        %v989 = vld [vmem:[#allocation2 + $0xc2] sm:$0xff]
        %v990 = vld [vmem:[#allocation2 + $0xca] sm:$0xff]
        %v991 = vld [vmem:[#allocation2 + $0xda] sm:$0xff]
        %v992 = vld [vmem:[#allocation2 + $0xe2] sm:$0xff]
        %v993 = vld [vmem:[#allocation2 + $0xf2] sm:$0xff]
        %v994 = vld [vmem:[#allocation2 + $0xfa] sm:$0xff]
        %v995 = vld [vmem:[#allocation2 + $0x10a] sm:$0xff]
        %v996 = vld [vmem:[#allocation2 + $0x112] sm:$0xff]
        %v997 = vld [vmem:[#allocation2 + $0x122] sm:$0xff]
        %v998 = vld [vmem:[#allocation2 + $0x12a] sm:$0xff]
        %v999 = vld [vmem:[#allocation2 + $0x13a] sm:$0xff]
        %v1000 = vld [vmem:[#allocation2 + $0x142] sm:$0xff]
        %v1001 = vld [vmem:[#allocation2 + $0x152] sm:$0xff]
        %v1002 = vld [vmem:[#allocation2 + $0x15a] sm:$0xff]
        %v1003 = vld [vmem:[#allocation2 + $0x16a] sm:$0xff]
        %v1004 = vld [vmem:[#allocation2 + $0x172] sm:$0xff]
        %v1005 = vpack.c.bf16 %v974, %v973
        %v1006 = vpack.c.bf16 %v976, %v975
        %v1007 = vpack.c.bf16 %v978, %v977
        %v1008 = vpack.c.bf16 %v980, %v979
        %v1009 = vpack.c.bf16 %v982, %v981
        %v1010 = vpack.c.bf16 %v984, %v983
        %v1011 = vpack.c.bf16 %v986, %v985
        %v1012 = vpack.c.bf16 %v988, %v987
        %v1013 = vpack.c.bf16 %v990, %v989
        %v1014 = vpack.c.bf16 %v992, %v991
        %v1015 = vpack.c.bf16 %v994, %v993
        %v1016 = vpack.c.bf16 %v996, %v995
        %v1017 = vpack.c.bf16 %v998, %v997
        %v1018 = vpack.c.bf16 %v1000, %v999
        %v1019 = vpack.c.bf16 %v1002, %v1001
        %v1020 = vpack.c.bf16 %v1004, %v1003
        %s1021 = scalar_lea.vmem [#allocation6], 128
        %v1022 = vld [vmem:[%s1021] sm:$0xf]
        %v1023 = vld [vmem:[%s1021 + $0x4] sm:$0xf]
        %v1024 = vld [vmem:[%s1021 + $0x8] sm:$0xf]
        %v1025 = vld [vmem:[%s1021 + $0xc] sm:$0xf]
        %v1026 = vld [vmem:[%s1021 + $0x10] sm:$0xf]
        %v1027 = vld [vmem:[%s1021 + $0x14] sm:$0xf]
        %v1028 = vld [vmem:[%s1021 + $0x18] sm:$0xf]
        %v1029 = vld [vmem:[%s1021 + $0x1c] sm:$0xf]
        %v1030 = vld [vmem:[%s1021 + $0x20] sm:$0xf]
        %v1031 = vld [vmem:[%s1021 + $0x24] sm:$0xf]
        %v1032 = vld [vmem:[%s1021 + $0x28] sm:$0xf]
        %v1033 = vld [vmem:[%s1021 + $0x2c] sm:$0xf]
        %v1034 = vld [vmem:[%s1021 + $0x30] sm:$0xf]
        %v1035 = vld [vmem:[%s1021 + $0x34] sm:$0xf]
        %v1036 = vld [vmem:[%s1021 + $0x38] sm:$0xf]
        %v1037 = vld [vmem:[%s1021 + $0x3c] sm:$0xf]
        %v1054 = vunpack.c.l.b16 %v1022
        %v1055 = vunpack.c.l.b16 %v1023
        %v1056 = vunpack.c.l.b16 %v1024
        %v1057 = vunpack.c.l.b16 %v1025
        %v1058 = vunpack.c.l.b16 %v1026
        %v1059 = vunpack.c.l.b16 %v1027
        %v1060 = vunpack.c.l.b16 %v1028
        %v1061 = vunpack.c.l.b16 %v1029
        %v1062 = vunpack.c.l.b16 %v1030
        %v1063 = vunpack.c.l.b16 %v1031
        %v1064 = vunpack.c.l.b16 %v1032
        %v1065 = vunpack.c.l.b16 %v1033
        %v1066 = vunpack.c.l.b16 %v1034
        %v1067 = vunpack.c.l.b16 %v1035
        %v1068 = vunpack.c.l.b16 %v1036
        %v1069 = vunpack.c.l.b16 %v1037
        %v1070 = vpack.c.b16 %v1055, %v1054
        %v1071 = vpack.c.b16 %v1057, %v1056
        %v1072 = vpack.c.b16 %v1059, %v1058
        %v1073 = vpack.c.b16 %v1061, %v1060
        %v1074 = vpack.c.b16 %v1063, %v1062
        %v1075 = vpack.c.b16 %v1065, %v1064
        %v1076 = vpack.c.b16 %v1067, %v1066
        %v1077 = vpack.c.b16 %v1069, %v1068
        %1086 = vmatprep.subr.bf16.mxu0 0
        %1087 = vmatpush1.bf16.msra.mxu0 %v1070
        %1088 = vmatprep.subr.bf16.mxu0 0
        %1089 = vmatpush1.bf16.msra.mxu0 %v1071
        %1090 = vmatprep.subr.bf16.mxu0 0
        %1091 = vmatpush1.bf16.msra.mxu0 %v1072
        %1092 = vmatprep.subr.bf16.mxu0 0
        %1093 = vmatpush1.bf16.msra.mxu0 %v1073
        %1094 = vmatprep.subr.bf16.mxu0 0
        %1095 = vmatpush1.bf16.msra.mxu0 %v1074
        %1096 = vmatprep.subr.bf16.mxu0 0
        %1097 = vmatpush1.bf16.msra.mxu0 %v1075
        %1098 = vmatprep.subr.bf16.mxu0 0
        %1099 = vmatpush1.bf16.msra.mxu0 %v1076
        %1100 = vmatprep.subr.bf16.mxu0 0
        %1101 = vmatpush1.bf16.msra.mxu0 %v1077
        %1102 = vmatprep.subr.bf16.mxu0 0
        %1103 = vmatpush1.bf16.msra.mxu0 0
        %1104 = vmatprep.subr.bf16.mxu0 0
        %1105 = vmatpush1.bf16.msra.mxu0 0
        %1106 = vmatprep.subr.bf16.mxu0 0
        %1107 = vmatpush1.bf16.msra.mxu0 0
        %1108 = vmatprep.subr.bf16.mxu0 0
        %1109 = vmatpush1.bf16.msra.mxu0 0
        %1110 = vmatprep.subr.bf16.mxu0 0
        %1111 = vmatpush1.bf16.msra.mxu0 0
        %1112 = vmatprep.subr.bf16.mxu0 0
        %1113 = vmatpush1.bf16.msra.mxu0 0
        %1114 = vmatprep.subr.bf16.mxu0 0
        %1115 = vmatpush1.bf16.msra.mxu0 0
        %1116 = vmatprep.subr.bf16.mxu0 0
        %1117 = vmatpush1.bf16.msra.mxu0 0
        %1118 = vmatprep.mubr.bf16.mxu0 0
        %1119 = vmatmul.mubr.bf16.gmra.mrb[0].mxu0 %v1005
        %v1120 = vpop.f32.mrb[0].mxu0
        %v1121 = vadd.f32 0.0, %v1120
        %v1122 = vpop.f32.mrb[0].mxu0
        %v1123 = vpop.f32.mrb[0].mxu0
        %v1124 = vadd.f32 0.0, %v1123
        %v1125 = vpop.f32.mrb[0].mxu0
        %1126 = vmatprep.mubr.bf16.mxu0 0
        %1127 = vmatmul.mubr.bf16.gmra.mrb[0].mxu0 %v1006
        %v1128 = vpop.f32.mrb[0].mxu0
        %v1129 = vadd.f32 0.0, %v1128
        %v1130 = vpop.f32.mrb[0].mxu0
        %v1131 = vpop.f32.mrb[0].mxu0
        %v1132 = vadd.f32 0.0, %v1131
        %v1133 = vpop.f32.mrb[0].mxu0
        %1134 = vmatprep.mubr.bf16.mxu0 0
        %1135 = vmatmul.mubr.bf16.gmra.mrb[0].mxu0 %v1007
        %v1136 = vpop.f32.mrb[0].mxu0
        %v1137 = vadd.f32 0.0, %v1136
        %v1138 = vpop.f32.mrb[0].mxu0
        %v1139 = vpop.f32.mrb[0].mxu0
        %v1140 = vadd.f32 0.0, %v1139
        %v1141 = vpop.f32.mrb[0].mxu0
        %1142 = vmatprep.mubr.bf16.mxu0 0
        %1143 = vmatmul.mubr.bf16.gmra.mrb[0].mxu0 %v1008
        %v1144 = vpop.f32.mrb[0].mxu0
        %v1145 = vadd.f32 0.0, %v1144
        %v1146 = vpop.f32.mrb[0].mxu0
        %v1147 = vpop.f32.mrb[0].mxu0
        %v1148 = vadd.f32 0.0, %v1147
        %v1149 = vpop.f32.mrb[0].mxu0
        %1150 = vmatprep.mubr.bf16.mxu0 0
        %1151 = vmatmul.mubr.bf16.gmra.mrb[0].mxu0 %v1009
        %v1152 = vpop.f32.mrb[0].mxu0
        %v1153 = vadd.f32 0.0, %v1152
        %v1154 = vpop.f32.mrb[0].mxu0
        %v1155 = vpop.f32.mrb[0].mxu0
        %v1156 = vadd.f32 0.0, %v1155
        %v1157 = vpop.f32.mrb[0].mxu0
        %1158 = vmatprep.mubr.bf16.mxu0 0
        %1159 = vmatmul.mubr.bf16.gmra.mrb[0].mxu0 %v1010
        %v1160 = vpop.f32.mrb[0].mxu0
        %v1161 = vadd.f32 0.0, %v1160
        %v1162 = vpop.f32.mrb[0].mxu0
        %v1163 = vpop.f32.mrb[0].mxu0
        %v1164 = vadd.f32 0.0, %v1163
        %v1165 = vpop.f32.mrb[0].mxu0
        %1166 = vmatprep.mubr.bf16.mxu0 0
        %1167 = vmatmul.mubr.bf16.gmra.mrb[0].mxu0 %v1011
        %v1168 = vpop.f32.mrb[0].mxu0
        %v1169 = vadd.f32 0.0, %v1168
        %v1170 = vpop.f32.mrb[0].mxu0
        %v1171 = vpop.f32.mrb[0].mxu0
        %v1172 = vadd.f32 0.0, %v1171
        %v1173 = vpop.f32.mrb[0].mxu0
        %1174 = vmatprep.mubr.bf16.mxu0 0
        %1175 = vmatmul.mubr.bf16.gmra.mrb[0].mxu0 %v1012
        %v1176 = vpop.f32.mrb[0].mxu0
        %v1177 = vadd.f32 0.0, %v1176
        %v1178 = vpop.f32.mrb[0].mxu0
        %v1179 = vpop.f32.mrb[0].mxu0
        %v1180 = vadd.f32 0.0, %v1179
        %v1181 = vpop.f32.mrb[0].mxu0
        %1182 = vmatprep.mubr.bf16.mxu0 0
        %1183 = vmatmul.mubr.bf16.gmra.mrb[0].mxu0 %v1013
        %v1184 = vpop.f32.mrb[0].mxu0
        %v1185 = vadd.f32 0.0, %v1184
        %v1186 = vpop.f32.mrb[0].mxu0
        %v1187 = vpop.f32.mrb[0].mxu0
        %v1188 = vadd.f32 0.0, %v1187
        %v1189 = vpop.f32.mrb[0].mxu0
        %1190 = vmatprep.mubr.bf16.mxu0 0
        %1191 = vmatmul.mubr.bf16.gmra.mrb[0].mxu0 %v1014
        %v1192 = vpop.f32.mrb[0].mxu0
        %v1193 = vadd.f32 0.0, %v1192
        %v1194 = vpop.f32.mrb[0].mxu0
        %v1195 = vpop.f32.mrb[0].mxu0
        %v1196 = vadd.f32 0.0, %v1195
        %v1197 = vpop.f32.mrb[0].mxu0
        %1198 = vmatprep.mubr.bf16.mxu0 0
        %1199 = vmatmul.mubr.bf16.gmra.mrb[0].mxu0 %v1015
        %v1200 = vpop.f32.mrb[0].mxu0
        %v1201 = vadd.f32 0.0, %v1200
        %v1202 = vpop.f32.mrb[0].mxu0
        %v1203 = vpop.f32.mrb[0].mxu0
        %v1204 = vadd.f32 0.0, %v1203
        %v1205 = vpop.f32.mrb[0].mxu0
        %1206 = vmatprep.mubr.bf16.mxu0 0
        %1207 = vmatmul.mubr.bf16.gmra.mrb[0].mxu0 %v1016
        %v1208 = vpop.f32.mrb[0].mxu0
        %v1209 = vadd.f32 0.0, %v1208
        %v1210 = vpop.f32.mrb[0].mxu0
        %v1211 = vpop.f32.mrb[0].mxu0
        %v1212 = vadd.f32 0.0, %v1211
        %v1213 = vpop.f32.mrb[0].mxu0
        %1214 = vmatprep.mubr.bf16.mxu0 0
        %1215 = vmatmul.mubr.bf16.gmra.mrb[0].mxu0 %v1017
        %v1216 = vpop.f32.mrb[0].mxu0
        %v1217 = vadd.f32 0.0, %v1216
        %v1218 = vpop.f32.mrb[0].mxu0
        %v1219 = vpop.f32.mrb[0].mxu0
        %v1220 = vadd.f32 0.0, %v1219
        %v1221 = vpop.f32.mrb[0].mxu0
        %1222 = vmatprep.mubr.bf16.mxu0 0
        %1223 = vmatmul.mubr.bf16.gmra.mrb[0].mxu0 %v1018
        %v1224 = vpop.f32.mrb[0].mxu0
        %v1225 = vadd.f32 0.0, %v1224
        %v1226 = vpop.f32.mrb[0].mxu0
        %v1227 = vpop.f32.mrb[0].mxu0
        %v1228 = vadd.f32 0.0, %v1227
        %v1229 = vpop.f32.mrb[0].mxu0
        %1230 = vmatprep.mubr.bf16.mxu0 0
        %1231 = vmatmul.mubr.bf16.gmra.mrb[0].mxu0 %v1019
        %v1232 = vpop.f32.mrb[0].mxu0
        %v1233 = vadd.f32 0.0, %v1232
        %v1234 = vpop.f32.mrb[0].mxu0
        %v1235 = vpop.f32.mrb[0].mxu0
        %v1236 = vadd.f32 0.0, %v1235
        %v1237 = vpop.f32.mrb[0].mxu0
        %1238 = vmatprep.mubr.bf16.mxu0 0
        %1239 = vmatmul.mubr.bf16.gmra.mrb[0].mxu0 %v1020
        %v1240 = vpop.f32.mrb[0].mxu0
        %v1241 = vadd.f32 0.0, %v1240
        %v1242 = vpop.f32.mrb[0].mxu0
        %v1243 = vpop.f32.mrb[0].mxu0
        %v1244 = vadd.f32 0.0, %v1243
        %v1245 = vpop.f32.mrb[0].mxu0
        %1246 = vdwg.mxu0
        %v1247 = vadd.f32 %v847, %v1121
        %v1248 = vadd.f32 %v850, %v1124
        %v1249 = vadd.f32 %v855, %v1129
        %v1250 = vadd.f32 %v858, %v1132
        %v1251 = vadd.f32 %v863, %v1137
        %v1252 = vadd.f32 %v866, %v1140
        %v1253 = vadd.f32 %v871, %v1145
        %v1254 = vadd.f32 %v874, %v1148
        %v1255 = vadd.f32 %v879, %v1153
        %v1256 = vadd.f32 %v882, %v1156
        %v1257 = vadd.f32 %v887, %v1161
        %v1258 = vadd.f32 %v890, %v1164
        %v1259 = vadd.f32 %v895, %v1169
        %v1260 = vadd.f32 %v898, %v1172
        %v1261 = vadd.f32 %v903, %v1177
        %v1262 = vadd.f32 %v906, %v1180
        %v1263 = vadd.f32 %v911, %v1185
        %v1264 = vadd.f32 %v914, %v1188
        %v1265 = vadd.f32 %v919, %v1193
        %v1266 = vadd.f32 %v922, %v1196
        %v1267 = vadd.f32 %v927, %v1201
        %v1268 = vadd.f32 %v930, %v1204
        %v1269 = vadd.f32 %v935, %v1209
        %v1270 = vadd.f32 %v938, %v1212
        %v1271 = vadd.f32 %v943, %v1217
        %v1272 = vadd.f32 %v946, %v1220
        %v1273 = vadd.f32 %v951, %v1225
        %v1274 = vadd.f32 %v954, %v1228
        %v1275 = vadd.f32 %v959, %v1233
        %v1276 = vadd.f32 %v962, %v1236
        %v1277 = vadd.f32 %v967, %v1241
        %v1278 = vadd.f32 %v970, %v1244
        %v1279 = vld [vmem:[%s2] sm:$0x1]
        %v1281 = vlaneseq
        %v1282 = vshrl.u32 %v1281, 7
        %v1283 = vsub.s32 0, %v1282
        %v1284 = vrot.slane %v1279, %v1283
        %v1286 = vmul.f32 %v1247, %v1284
        %v1287 = vmul.f32 %v1248, %v1284
        %v1288 = vmul.f32 %v1249, %v1284
        %v1289 = vmul.f32 %v1250, %v1284
        %v1290 = vmul.f32 %v1251, %v1284
        %v1291 = vmul.f32 %v1252, %v1284
        %v1292 = vmul.f32 %v1253, %v1284
        %v1293 = vmul.f32 %v1254, %v1284
        %v1294 = vmul.f32 %v1255, %v1284
        %v1295 = vmul.f32 %v1256, %v1284
        %v1296 = vmul.f32 %v1257, %v1284
        %v1297 = vmul.f32 %v1258, %v1284
        %v1298 = vmul.f32 %v1259, %v1284
        %v1299 = vmul.f32 %v1260, %v1284
        %v1300 = vmul.f32 %v1261, %v1284
        %v1301 = vmul.f32 %v1262, %v1284
        %v1302 = vmul.f32 %v1263, %v1284
        %v1303 = vmul.f32 %v1264, %v1284
        %v1304 = vmul.f32 %v1265, %v1284
        %v1305 = vmul.f32 %v1266, %v1284
        %v1306 = vmul.f32 %v1267, %v1284
        %v1307 = vmul.f32 %v1268, %v1284
        %v1308 = vmul.f32 %v1269, %v1284
        %v1309 = vmul.f32 %v1270, %v1284
        %v1310 = vmul.f32 %v1271, %v1284
        %v1311 = vmul.f32 %v1272, %v1284
        %v1312 = vmul.f32 %v1273, %v1284
        %v1313 = vmul.f32 %v1274, %v1284
        %v1314 = vmul.f32 %v1275, %v1284
        %v1315 = vmul.f32 %v1276, %v1284
        %v1316 = vmul.f32 %v1277, %v1284
        %v1317 = vmul.f32 %v1278, %v1284
        %v1318 = vld [vmem:[%s3] sm:$0x1]
        %v1320 = vlaneseq
        %v1321 = vshrl.u32 %v1320, 7
        %v1322 = vsub.s32 0, %v1321
        %v1323 = vrot.slane %v1318, %v1322
        %v1325 = vadd.f32 %v1286, %v1323
        %v1326 = vadd.f32 %v1287, %v1323
        %v1327 = vadd.f32 %v1288, %v1323
        %v1328 = vadd.f32 %v1289, %v1323
        %v1329 = vadd.f32 %v1290, %v1323
        %v1330 = vadd.f32 %v1291, %v1323
        %v1331 = vadd.f32 %v1292, %v1323
        %v1332 = vadd.f32 %v1293, %v1323
        %v1333 = vadd.f32 %v1294, %v1323
        %v1334 = vadd.f32 %v1295, %v1323
        %v1335 = vadd.f32 %v1296, %v1323
        %v1336 = vadd.f32 %v1297, %v1323
        %v1337 = vadd.f32 %v1298, %v1323
        %v1338 = vadd.f32 %v1299, %v1323
        %v1339 = vadd.f32 %v1300, %v1323
        %v1340 = vadd.f32 %v1301, %v1323
        %v1341 = vadd.f32 %v1302, %v1323
        %v1342 = vadd.f32 %v1303, %v1323
        %v1343 = vadd.f32 %v1304, %v1323
        %v1344 = vadd.f32 %v1305, %v1323
        %v1345 = vadd.f32 %v1306, %v1323
        %v1346 = vadd.f32 %v1307, %v1323
        %v1347 = vadd.f32 %v1308, %v1323
        %v1348 = vadd.f32 %v1309, %v1323
        %v1349 = vadd.f32 %v1310, %v1323
        %v1350 = vadd.f32 %v1311, %v1323
        %v1351 = vadd.f32 %v1312, %v1323
        %v1352 = vadd.f32 %v1313, %v1323
        %v1353 = vadd.f32 %v1314, %v1323
        %v1354 = vadd.f32 %v1315, %v1323
        %v1355 = vadd.f32 %v1316, %v1323
        %v1356 = vadd.f32 %v1317, %v1323
        %v1357 = vmax.f32 %v1325, 0.0
        %v1358 = vmax.f32 %v1326, 0.0
        %v1359 = vmax.f32 %v1327, 0.0
        %v1360 = vmax.f32 %v1328, 0.0
        %v1361 = vmax.f32 %v1329, 0.0
        %v1362 = vmax.f32 %v1330, 0.0
        %v1363 = vmax.f32 %v1331, 0.0
        %v1364 = vmax.f32 %v1332, 0.0
        %v1365 = vmax.f32 %v1333, 0.0
        %v1366 = vmax.f32 %v1334, 0.0
        %v1367 = vmax.f32 %v1335, 0.0
        %v1368 = vmax.f32 %v1336, 0.0
        %v1369 = vmax.f32 %v1337, 0.0
        %v1370 = vmax.f32 %v1338, 0.0
        %v1371 = vmax.f32 %v1339, 0.0
        %v1372 = vmax.f32 %v1340, 0.0
        %v1373 = vmax.f32 %v1341, 0.0
        %v1374 = vmax.f32 %v1342, 0.0
        %v1375 = vmax.f32 %v1343, 0.0
        %v1376 = vmax.f32 %v1344, 0.0
        %v1377 = vmax.f32 %v1345, 0.0
        %v1378 = vmax.f32 %v1346, 0.0
        %v1379 = vmax.f32 %v1347, 0.0
        %v1380 = vmax.f32 %v1348, 0.0
        %v1381 = vmax.f32 %v1349, 0.0
        %v1382 = vmax.f32 %v1350, 0.0
        %v1383 = vmax.f32 %v1351, 0.0
        %v1384 = vmax.f32 %v1352, 0.0
        %v1385 = vmax.f32 %v1353, 0.0
        %v1386 = vmax.f32 %v1354, 0.0
        %v1387 = vmax.f32 %v1355, 0.0
        %v1388 = vmax.f32 %v1356, 0.0
        %1389 = vst [vmem:[#allocation2 + $0x1] sm:$0xff] %v1357
        %1390 = vst [vmem:[#allocation2 + $0x9] sm:$0xff] %v1358
        %1391 = vst [vmem:[#allocation2 + $0x19] sm:$0xff] %v1359
        %1392 = vst [vmem:[#allocation2 + $0x21] sm:$0xff] %v1360
        %1393 = vst [vmem:[#allocation2 + $0x31] sm:$0xff] %v1361
        %1394 = vst [vmem:[#allocation2 + $0x39] sm:$0xff] %v1362
        %1395 = vst [vmem:[#allocation2 + $0x49] sm:$0xff] %v1363
        %1396 = vst [vmem:[#allocation2 + $0x51] sm:$0xff] %v1364
        %1397 = vst [vmem:[#allocation2 + $0x61] sm:$0xff] %v1365
        %1398 = vst [vmem:[#allocation2 + $0x69] sm:$0xff] %v1366
        %1399 = vst [vmem:[#allocation2 + $0x79] sm:$0xff] %v1367
        %1400 = vst [vmem:[#allocation2 + $0x81] sm:$0xff] %v1368
        %1401 = vst [vmem:[#allocation2 + $0x91] sm:$0xff] %v1369
        %1402 = vst [vmem:[#allocation2 + $0x99] sm:$0xff] %v1370
        %1403 = vst [vmem:[#allocation2 + $0xa9] sm:$0xff] %v1371
        %1404 = vst [vmem:[#allocation2 + $0xb1] sm:$0xff] %v1372
        %1405 = vst [vmem:[#allocation2 + $0xc1] sm:$0xff] %v1373
        %1406 = vst [vmem:[#allocation2 + $0xc9] sm:$0xff] %v1374
        %1407 = vst [vmem:[#allocation2 + $0xd9] sm:$0xff] %v1375
        %1408 = vst [vmem:[#allocation2 + $0xe1] sm:$0xff] %v1376
        %1409 = vst [vmem:[#allocation2 + $0xf1] sm:$0xff] %v1377
        %1410 = vst [vmem:[#allocation2 + $0xf9] sm:$0xff] %v1378
        %1411 = vst [vmem:[#allocation2 + $0x109] sm:$0xff] %v1379
        %1412 = vst [vmem:[#allocation2 + $0x111] sm:$0xff] %v1380
        %1413 = vst [vmem:[#allocation2 + $0x121] sm:$0xff] %v1381
        %1414 = vst [vmem:[#allocation2 + $0x129] sm:$0xff] %v1382
        %1415 = vst [vmem:[#allocation2 + $0x139] sm:$0xff] %v1383
        %1416 = vst [vmem:[#allocation2 + $0x141] sm:$0xff] %v1384
        %1417 = vst [vmem:[#allocation2 + $0x151] sm:$0xff] %v1385
        %1418 = vst [vmem:[#allocation2 + $0x159] sm:$0xff] %v1386
        %1419 = vst [vmem:[#allocation2 + $0x169] sm:$0xff] %v1387
        %1420 = vst [vmem:[#allocation2 + $0x171] sm:$0xff] %v1388
        %v1421 = vld [vmem:[#allocation2 + $0x1] sm:$0xff]
        %v1422 = vld [vmem:[#allocation2 + $0x9] sm:$0xff]
        %v1423 = vld [vmem:[#allocation2 + $0x19] sm:$0xff]
        %v1424 = vld [vmem:[#allocation2 + $0x21] sm:$0xff]
        %v1425 = vld [vmem:[#allocation2 + $0x31] sm:$0xff]
        %v1426 = vld [vmem:[#allocation2 + $0x39] sm:$0xff]
        %v1427 = vld [vmem:[#allocation2 + $0x49] sm:$0xff]
        %v1428 = vld [vmem:[#allocation2 + $0x51] sm:$0xff]
        %v1429 = vld [vmem:[#allocation2 + $0x61] sm:$0xff]
        %v1430 = vld [vmem:[#allocation2 + $0x69] sm:$0xff]
        %v1431 = vld [vmem:[#allocation2 + $0x79] sm:$0xff]
        %v1432 = vld [vmem:[#allocation2 + $0x81] sm:$0xff]
        %v1433 = vld [vmem:[#allocation2 + $0x91] sm:$0xff]
        %v1434 = vld [vmem:[#allocation2 + $0x99] sm:$0xff]
        %v1435 = vld [vmem:[#allocation2 + $0xa9] sm:$0xff]
        %v1436 = vld [vmem:[#allocation2 + $0xb1] sm:$0xff]
        %v1437 = vld [vmem:[#allocation2 + $0xc1] sm:$0xff]
        %v1438 = vld [vmem:[#allocation2 + $0xc9] sm:$0xff]
        %v1439 = vld [vmem:[#allocation2 + $0xd9] sm:$0xff]
        %v1440 = vld [vmem:[#allocation2 + $0xe1] sm:$0xff]
        %v1441 = vld [vmem:[#allocation2 + $0xf1] sm:$0xff]
        %v1442 = vld [vmem:[#allocation2 + $0xf9] sm:$0xff]
        %v1443 = vld [vmem:[#allocation2 + $0x109] sm:$0xff]
        %v1444 = vld [vmem:[#allocation2 + $0x111] sm:$0xff]
        %v1445 = vld [vmem:[#allocation2 + $0x121] sm:$0xff]
        %v1446 = vld [vmem:[#allocation2 + $0x129] sm:$0xff]
        %v1447 = vld [vmem:[#allocation2 + $0x139] sm:$0xff]
        %v1448 = vld [vmem:[#allocation2 + $0x141] sm:$0xff]
        %v1449 = vld [vmem:[#allocation2 + $0x151] sm:$0xff]
        %v1450 = vld [vmem:[#allocation2 + $0x159] sm:$0xff]
        %v1451 = vld [vmem:[#allocation2 + $0x169] sm:$0xff]
        %v1452 = vld [vmem:[#allocation2 + $0x171] sm:$0xff]
        %v1453 = vpack.c.bf16 %v1422, %v1421
        %v1454 = vpack.c.bf16 %v1424, %v1423
        %v1455 = vpack.c.bf16 %v1426, %v1425
        %v1456 = vpack.c.bf16 %v1428, %v1427
        %v1457 = vpack.c.bf16 %v1430, %v1429
        %v1458 = vpack.c.bf16 %v1432, %v1431
        %v1459 = vpack.c.bf16 %v1434, %v1433
        %v1460 = vpack.c.bf16 %v1436, %v1435
        %v1461 = vpack.c.bf16 %v1438, %v1437
        %v1462 = vpack.c.bf16 %v1440, %v1439
        %v1463 = vpack.c.bf16 %v1442, %v1441
        %v1464 = vpack.c.bf16 %v1444, %v1443
        %v1465 = vpack.c.bf16 %v1446, %v1445
        %v1466 = vpack.c.bf16 %v1448, %v1447
        %v1467 = vpack.c.bf16 %v1450, %v1449
        %v1468 = vpack.c.bf16 %v1452, %v1451
        %s1469 = scalar_lea.vmem [#allocation8], 64
        %v1470 = vld [vmem:[%s1469] sm:$0xf]
        %v1471 = vld [vmem:[%s1469 + $0x4] sm:$0xf]
        %v1472 = vld [vmem:[%s1469 + $0x8] sm:$0xf]
        %v1473 = vld [vmem:[%s1469 + $0xc] sm:$0xf]
        %v1474 = vld [vmem:[%s1469 + $0x10] sm:$0xf]
        %v1475 = vld [vmem:[%s1469 + $0x14] sm:$0xf]
        %v1476 = vld [vmem:[%s1469 + $0x18] sm:$0xf]
        %v1477 = vld [vmem:[%s1469 + $0x1c] sm:$0xf]
        %v1478 = vld [vmem:[%s1469 + $0x20] sm:$0xf]
        %v1479 = vld [vmem:[%s1469 + $0x24] sm:$0xf]
        %v1480 = vld [vmem:[%s1469 + $0x28] sm:$0xf]
        %v1481 = vld [vmem:[%s1469 + $0x2c] sm:$0xf]
        %v1482 = vld [vmem:[%s1469 + $0x30] sm:$0xf]
        %v1483 = vld [vmem:[%s1469 + $0x34] sm:$0xf]
        %v1484 = vld [vmem:[%s1469 + $0x38] sm:$0xf]
        %v1485 = vld [vmem:[%s1469 + $0x3c] sm:$0xf]
        %v1486 = vld [vmem:[#allocation2] sm:$0xff]
        %v1487 = vld [vmem:[#allocation2 + $0x8] sm:$0xff]
        %v1488 = vld [vmem:[#allocation2 + $0x18] sm:$0xff]
        %v1489 = vld [vmem:[#allocation2 + $0x20] sm:$0xff]
        %v1490 = vld [vmem:[#allocation2 + $0x30] sm:$0xff]
        %v1491 = vld [vmem:[#allocation2 + $0x38] sm:$0xff]
        %v1492 = vld [vmem:[#allocation2 + $0x48] sm:$0xff]
        %v1493 = vld [vmem:[#allocation2 + $0x50] sm:$0xff]
        %v1494 = vld [vmem:[#allocation2 + $0x60] sm:$0xff]
        %v1495 = vld [vmem:[#allocation2 + $0x68] sm:$0xff]
        %v1496 = vld [vmem:[#allocation2 + $0x78] sm:$0xff]
        %v1497 = vld [vmem:[#allocation2 + $0x80] sm:$0xff]
        %v1498 = vld [vmem:[#allocation2 + $0x90] sm:$0xff]
        %v1499 = vld [vmem:[#allocation2 + $0x98] sm:$0xff]
        %v1500 = vld [vmem:[#allocation2 + $0xa8] sm:$0xff]
        %v1501 = vld [vmem:[#allocation2 + $0xb0] sm:$0xff]
        %v1502 = vld [vmem:[#allocation2 + $0xc0] sm:$0xff]
        %v1503 = vld [vmem:[#allocation2 + $0xc8] sm:$0xff]
        %v1504 = vld [vmem:[#allocation2 + $0xd8] sm:$0xff]
        %v1505 = vld [vmem:[#allocation2 + $0xe0] sm:$0xff]
        %v1506 = vld [vmem:[#allocation2 + $0xf0] sm:$0xff]
        %v1507 = vld [vmem:[#allocation2 + $0xf8] sm:$0xff]
        %v1508 = vld [vmem:[#allocation2 + $0x108] sm:$0xff]
        %v1509 = vld [vmem:[#allocation2 + $0x110] sm:$0xff]
        %v1510 = vld [vmem:[#allocation2 + $0x120] sm:$0xff]
        %v1511 = vld [vmem:[#allocation2 + $0x128] sm:$0xff]
        %v1512 = vld [vmem:[#allocation2 + $0x138] sm:$0xff]
        %v1513 = vld [vmem:[#allocation2 + $0x140] sm:$0xff]
        %v1514 = vld [vmem:[#allocation2 + $0x150] sm:$0xff]
        %v1515 = vld [vmem:[#allocation2 + $0x158] sm:$0xff]
        %v1516 = vld [vmem:[#allocation2 + $0x168] sm:$0xff]
        %v1517 = vld [vmem:[#allocation2 + $0x170] sm:$0xff]
        %v1518 = vpack.c.bf16 %v1487, %v1486
        %v1519 = vpack.c.bf16 %v1489, %v1488
        %v1520 = vpack.c.bf16 %v1491, %v1490
        %v1521 = vpack.c.bf16 %v1493, %v1492
        %v1522 = vpack.c.bf16 %v1495, %v1494
        %v1523 = vpack.c.bf16 %v1497, %v1496
        %v1524 = vpack.c.bf16 %v1499, %v1498
        %v1525 = vpack.c.bf16 %v1501, %v1500
        %v1526 = vpack.c.bf16 %v1503, %v1502
        %v1527 = vpack.c.bf16 %v1505, %v1504
        %v1528 = vpack.c.bf16 %v1507, %v1506
        %v1529 = vpack.c.bf16 %v1509, %v1508
        %v1530 = vpack.c.bf16 %v1511, %v1510
        %v1531 = vpack.c.bf16 %v1513, %v1512
        %v1532 = vpack.c.bf16 %v1515, %v1514
        %v1533 = vpack.c.bf16 %v1517, %v1516
        %v1534 = vld [vmem:[#allocation8] sm:$0xf]
        %v1535 = vld [vmem:[#allocation8 + $0x4] sm:$0xf]
        %v1536 = vld [vmem:[#allocation8 + $0x8] sm:$0xf]
        %v1537 = vld [vmem:[#allocation8 + $0xc] sm:$0xf]
        %v1538 = vld [vmem:[#allocation8 + $0x10] sm:$0xf]
        %v1539 = vld [vmem:[#allocation8 + $0x14] sm:$0xf]
        %v1540 = vld [vmem:[#allocation8 + $0x18] sm:$0xf]
        %v1541 = vld [vmem:[#allocation8 + $0x1c] sm:$0xf]
        %v1542 = vld [vmem:[#allocation8 + $0x20] sm:$0xf]
        %v1543 = vld [vmem:[#allocation8 + $0x24] sm:$0xf]
        %v1544 = vld [vmem:[#allocation8 + $0x28] sm:$0xf]
        %v1545 = vld [vmem:[#allocation8 + $0x2c] sm:$0xf]
        %v1546 = vld [vmem:[#allocation8 + $0x30] sm:$0xf]
        %v1547 = vld [vmem:[#allocation8 + $0x34] sm:$0xf]
        %v1548 = vld [vmem:[#allocation8 + $0x38] sm:$0xf]
        %v1549 = vld [vmem:[#allocation8 + $0x3c] sm:$0xf]
        %v1566 = vunpack.c.l.b16 %v1534
        %v1567 = vunpack.c.l.b16 %v1535
        %v1568 = vunpack.c.l.b16 %v1536
        %v1569 = vunpack.c.l.b16 %v1537
        %v1570 = vunpack.c.l.b16 %v1538
        %v1571 = vunpack.c.l.b16 %v1539
        %v1572 = vunpack.c.l.b16 %v1540
        %v1573 = vunpack.c.l.b16 %v1541
        %v1574 = vunpack.c.l.b16 %v1542
        %v1575 = vunpack.c.l.b16 %v1543
        %v1576 = vunpack.c.l.b16 %v1544
        %v1577 = vunpack.c.l.b16 %v1545
        %v1578 = vunpack.c.l.b16 %v1546
        %v1579 = vunpack.c.l.b16 %v1547
        %v1580 = vunpack.c.l.b16 %v1548
        %v1581 = vunpack.c.l.b16 %v1549
        %v1582 = vpack.c.b16 %v1567, %v1566
        %v1583 = vpack.c.b16 %v1569, %v1568
        %v1584 = vpack.c.b16 %v1571, %v1570
        %v1585 = vpack.c.b16 %v1573, %v1572
        %v1586 = vpack.c.b16 %v1575, %v1574
        %v1587 = vpack.c.b16 %v1577, %v1576
        %v1588 = vpack.c.b16 %v1579, %v1578
        %v1589 = vpack.c.b16 %v1581, %v1580
        %1598 = vmatprep.subr.bf16.mxu0 0
        %1599 = vmatpush1.bf16.msra.mxu0 %v1582
        %1600 = vmatprep.subr.bf16.mxu0 0
        %1601 = vmatpush1.bf16.msra.mxu0 %v1583
        %1602 = vmatprep.subr.bf16.mxu0 0
        %1603 = vmatpush1.bf16.msra.mxu0 %v1584
        %1604 = vmatprep.subr.bf16.mxu0 0
        %1605 = vmatpush1.bf16.msra.mxu0 %v1585
        %1606 = vmatprep.subr.bf16.mxu0 0
        %1607 = vmatpush1.bf16.msra.mxu0 %v1586
        %1608 = vmatprep.subr.bf16.mxu0 0
        %1609 = vmatpush1.bf16.msra.mxu0 %v1587
        %1610 = vmatprep.subr.bf16.mxu0 0
        %1611 = vmatpush1.bf16.msra.mxu0 %v1588
        %1612 = vmatprep.subr.bf16.mxu0 0
        %1613 = vmatpush1.bf16.msra.mxu0 %v1589
        %1614 = vmatprep.subr.bf16.mxu0 0
        %1615 = vmatpush1.bf16.msra.mxu0 0
        %1616 = vmatprep.subr.bf16.mxu0 0
        %1617 = vmatpush1.bf16.msra.mxu0 0
        %1618 = vmatprep.subr.bf16.mxu0 0
        %1619 = vmatpush1.bf16.msra.mxu0 0
        %1620 = vmatprep.subr.bf16.mxu0 0
        %1621 = vmatpush1.bf16.msra.mxu0 0
        %1622 = vmatprep.subr.bf16.mxu0 0
        %1623 = vmatpush1.bf16.msra.mxu0 0
        %1624 = vmatprep.subr.bf16.mxu0 0
        %1625 = vmatpush1.bf16.msra.mxu0 0
        %1626 = vmatprep.subr.bf16.mxu0 0
        %1627 = vmatpush1.bf16.msra.mxu0 0
        %1628 = vmatprep.subr.bf16.mxu0 0
        %1629 = vmatpush1.bf16.msra.mxu0 0
        %1630 = vmatprep.mubr.bf16.mxu0 0
        %1631 = vmatmul.mubr.bf16.gmra.mrb[0].mxu0 %v1518
        %v1632 = vpop.f32.mrb[0].mxu0
        %v1633 = vadd.f32 0.0, %v1632
        %v1634 = vpop.f32.mrb[0].mxu0
        %v1635 = vpop.f32.mrb[0].mxu0
        %v1636 = vadd.f32 0.0, %v1635
        %v1637 = vpop.f32.mrb[0].mxu0
        %1638 = vmatprep.mubr.bf16.mxu0 0
        %1639 = vmatmul.mubr.bf16.gmra.mrb[0].mxu0 %v1519
        %v1640 = vpop.f32.mrb[0].mxu0
        %v1641 = vadd.f32 0.0, %v1640
        %v1642 = vpop.f32.mrb[0].mxu0
        %v1643 = vpop.f32.mrb[0].mxu0
        %v1644 = vadd.f32 0.0, %v1643
        %v1645 = vpop.f32.mrb[0].mxu0
        %1646 = vmatprep.mubr.bf16.mxu0 0
        %1647 = vmatmul.mubr.bf16.gmra.mrb[0].mxu0 %v1520
        %v1648 = vpop.f32.mrb[0].mxu0
        %v1649 = vadd.f32 0.0, %v1648
        %v1650 = vpop.f32.mrb[0].mxu0
        %v1651 = vpop.f32.mrb[0].mxu0
        %v1652 = vadd.f32 0.0, %v1651
        %v1653 = vpop.f32.mrb[0].mxu0
        %1654 = vmatprep.mubr.bf16.mxu0 0
        %1655 = vmatmul.mubr.bf16.gmra.mrb[0].mxu0 %v1521
        %v1656 = vpop.f32.mrb[0].mxu0
        %v1657 = vadd.f32 0.0, %v1656
        %v1658 = vpop.f32.mrb[0].mxu0
        %v1659 = vpop.f32.mrb[0].mxu0
        %v1660 = vadd.f32 0.0, %v1659
        %v1661 = vpop.f32.mrb[0].mxu0
        %1662 = vmatprep.mubr.bf16.mxu0 0
        %1663 = vmatmul.mubr.bf16.gmra.mrb[0].mxu0 %v1522
        %v1664 = vpop.f32.mrb[0].mxu0
        %v1665 = vadd.f32 0.0, %v1664
        %v1666 = vpop.f32.mrb[0].mxu0
        %v1667 = vpop.f32.mrb[0].mxu0
        %v1668 = vadd.f32 0.0, %v1667
        %v1669 = vpop.f32.mrb[0].mxu0
        %1670 = vmatprep.mubr.bf16.mxu0 0
        %1671 = vmatmul.mubr.bf16.gmra.mrb[0].mxu0 %v1523
        %v1672 = vpop.f32.mrb[0].mxu0
        %v1673 = vadd.f32 0.0, %v1672
        %v1674 = vpop.f32.mrb[0].mxu0
        %v1675 = vpop.f32.mrb[0].mxu0
        %v1676 = vadd.f32 0.0, %v1675
        %v1677 = vpop.f32.mrb[0].mxu0
        %1678 = vmatprep.mubr.bf16.mxu0 0
        %1679 = vmatmul.mubr.bf16.gmra.mrb[0].mxu0 %v1524
        %v1680 = vpop.f32.mrb[0].mxu0
        %v1681 = vadd.f32 0.0, %v1680
        %v1682 = vpop.f32.mrb[0].mxu0
        %v1683 = vpop.f32.mrb[0].mxu0
        %v1684 = vadd.f32 0.0, %v1683
        %v1685 = vpop.f32.mrb[0].mxu0
        %1686 = vmatprep.mubr.bf16.mxu0 0
        %1687 = vmatmul.mubr.bf16.gmra.mrb[0].mxu0 %v1525
        %v1688 = vpop.f32.mrb[0].mxu0
        %v1689 = vadd.f32 0.0, %v1688
        %v1690 = vpop.f32.mrb[0].mxu0
        %v1691 = vpop.f32.mrb[0].mxu0
        %v1692 = vadd.f32 0.0, %v1691
        %v1693 = vpop.f32.mrb[0].mxu0
        %1694 = vmatprep.mubr.bf16.mxu0 0
        %1695 = vmatmul.mubr.bf16.gmra.mrb[0].mxu0 %v1526
        %v1696 = vpop.f32.mrb[0].mxu0
        %v1697 = vadd.f32 0.0, %v1696
        %v1698 = vpop.f32.mrb[0].mxu0
        %v1699 = vpop.f32.mrb[0].mxu0
        %v1700 = vadd.f32 0.0, %v1699
        %v1701 = vpop.f32.mrb[0].mxu0
        %1702 = vmatprep.mubr.bf16.mxu0 0
        %1703 = vmatmul.mubr.bf16.gmra.mrb[0].mxu0 %v1527
        %v1704 = vpop.f32.mrb[0].mxu0
        %v1705 = vadd.f32 0.0, %v1704
        %v1706 = vpop.f32.mrb[0].mxu0
        %v1707 = vpop.f32.mrb[0].mxu0
        %v1708 = vadd.f32 0.0, %v1707
        %v1709 = vpop.f32.mrb[0].mxu0
        %1710 = vmatprep.mubr.bf16.mxu0 0
        %1711 = vmatmul.mubr.bf16.gmra.mrb[0].mxu0 %v1528
        %v1712 = vpop.f32.mrb[0].mxu0
        %v1713 = vadd.f32 0.0, %v1712
        %v1714 = vpop.f32.mrb[0].mxu0
        %v1715 = vpop.f32.mrb[0].mxu0
        %v1716 = vadd.f32 0.0, %v1715
        %v1717 = vpop.f32.mrb[0].mxu0
        %1718 = vmatprep.mubr.bf16.mxu0 0
        %1719 = vmatmul.mubr.bf16.gmra.mrb[0].mxu0 %v1529
        %v1720 = vpop.f32.mrb[0].mxu0
        %v1721 = vadd.f32 0.0, %v1720
        %v1722 = vpop.f32.mrb[0].mxu0
        %v1723 = vpop.f32.mrb[0].mxu0
        %v1724 = vadd.f32 0.0, %v1723
        %v1725 = vpop.f32.mrb[0].mxu0
        %1726 = vmatprep.mubr.bf16.mxu0 0
        %1727 = vmatmul.mubr.bf16.gmra.mrb[0].mxu0 %v1530
        %v1728 = vpop.f32.mrb[0].mxu0
        %v1729 = vadd.f32 0.0, %v1728
        %v1730 = vpop.f32.mrb[0].mxu0
        %v1731 = vpop.f32.mrb[0].mxu0
        %v1732 = vadd.f32 0.0, %v1731
        %v1733 = vpop.f32.mrb[0].mxu0
        %1734 = vmatprep.mubr.bf16.mxu0 0
        %1735 = vmatmul.mubr.bf16.gmra.mrb[0].mxu0 %v1531
        %v1736 = vpop.f32.mrb[0].mxu0
        %v1737 = vadd.f32 0.0, %v1736
        %v1738 = vpop.f32.mrb[0].mxu0
        %v1739 = vpop.f32.mrb[0].mxu0
        %v1740 = vadd.f32 0.0, %v1739
        %v1741 = vpop.f32.mrb[0].mxu0
        %1742 = vmatprep.mubr.bf16.mxu0 0
        %1743 = vmatmul.mubr.bf16.gmra.mrb[0].mxu0 %v1532
        %v1744 = vpop.f32.mrb[0].mxu0
        %v1745 = vadd.f32 0.0, %v1744
        %v1746 = vpop.f32.mrb[0].mxu0
        %v1747 = vpop.f32.mrb[0].mxu0
        %v1748 = vadd.f32 0.0, %v1747
        %v1749 = vpop.f32.mrb[0].mxu0
        %1750 = vmatprep.mubr.bf16.mxu0 0
        %1751 = vmatmul.mubr.bf16.gmra.mrb[0].mxu0 %v1533
        %v1752 = vpop.f32.mrb[0].mxu0
        %v1753 = vadd.f32 0.0, %v1752
        %v1754 = vpop.f32.mrb[0].mxu0
        %v1755 = vpop.f32.mrb[0].mxu0
        %v1756 = vadd.f32 0.0, %v1755
        %v1757 = vpop.f32.mrb[0].mxu0
        %1758 = vdwg.mxu0
        %v1775 = vunpack.c.l.b16 %v1470
        %v1776 = vunpack.c.l.b16 %v1471
        %v1777 = vunpack.c.l.b16 %v1472
        %v1778 = vunpack.c.l.b16 %v1473
        %v1779 = vunpack.c.l.b16 %v1474
        %v1780 = vunpack.c.l.b16 %v1475
        %v1781 = vunpack.c.l.b16 %v1476
        %v1782 = vunpack.c.l.b16 %v1477
        %v1783 = vunpack.c.l.b16 %v1478
        %v1784 = vunpack.c.l.b16 %v1479
        %v1785 = vunpack.c.l.b16 %v1480
        %v1786 = vunpack.c.l.b16 %v1481
        %v1787 = vunpack.c.l.b16 %v1482
        %v1788 = vunpack.c.l.b16 %v1483
        %v1789 = vunpack.c.l.b16 %v1484
        %v1790 = vunpack.c.l.b16 %v1485
        %v1791 = vpack.c.b16 %v1776, %v1775
        %v1792 = vpack.c.b16 %v1778, %v1777
        %v1793 = vpack.c.b16 %v1780, %v1779
        %v1794 = vpack.c.b16 %v1782, %v1781
        %v1795 = vpack.c.b16 %v1784, %v1783
        %v1796 = vpack.c.b16 %v1786, %v1785
        %v1797 = vpack.c.b16 %v1788, %v1787
        %v1798 = vpack.c.b16 %v1790, %v1789
        %1807 = vmatprep.subr.bf16.mxu0 0
        %1808 = vmatpush1.bf16.msra.mxu0 %v1791
        %1809 = vmatprep.subr.bf16.mxu0 0
        %1810 = vmatpush1.bf16.msra.mxu0 %v1792
        %1811 = vmatprep.subr.bf16.mxu0 0
        %1812 = vmatpush1.bf16.msra.mxu0 %v1793
        %1813 = vmatprep.subr.bf16.mxu0 0
        %1814 = vmatpush1.bf16.msra.mxu0 %v1794
        %1815 = vmatprep.subr.bf16.mxu0 0
        %1816 = vmatpush1.bf16.msra.mxu0 %v1795
        %1817 = vmatprep.subr.bf16.mxu0 0
        %1818 = vmatpush1.bf16.msra.mxu0 %v1796
        %1819 = vmatprep.subr.bf16.mxu0 0
        %1820 = vmatpush1.bf16.msra.mxu0 %v1797
        %1821 = vmatprep.subr.bf16.mxu0 0
        %1822 = vmatpush1.bf16.msra.mxu0 %v1798
        %1823 = vmatprep.subr.bf16.mxu0 0
        %1824 = vmatpush1.bf16.msra.mxu0 0
        %1825 = vmatprep.subr.bf16.mxu0 0
        %1826 = vmatpush1.bf16.msra.mxu0 0
        %1827 = vmatprep.subr.bf16.mxu0 0
        %1828 = vmatpush1.bf16.msra.mxu0 0
        %1829 = vmatprep.subr.bf16.mxu0 0
        %1830 = vmatpush1.bf16.msra.mxu0 0
        %1831 = vmatprep.subr.bf16.mxu0 0
        %1832 = vmatpush1.bf16.msra.mxu0 0
        %1833 = vmatprep.subr.bf16.mxu0 0
        %1834 = vmatpush1.bf16.msra.mxu0 0
        %1835 = vmatprep.subr.bf16.mxu0 0
        %1836 = vmatpush1.bf16.msra.mxu0 0
        %1837 = vmatprep.subr.bf16.mxu0 0
        %1838 = vmatpush1.bf16.msra.mxu0 0
        %1839 = vmatprep.mubr.bf16.mxu0 0
        %1840 = vmatmul.mubr.bf16.gmra.mrb[0].mxu0 %v1453
        %v1841 = vpop.f32.mrb[0].mxu0
        %v1842 = vadd.f32 %v1633, %v1841
        %v1843 = vpop.f32.mrb[0].mxu0
        %v1844 = vpop.f32.mrb[0].mxu0
        %v1845 = vadd.f32 %v1636, %v1844
        %v1846 = vpop.f32.mrb[0].mxu0
        %1847 = vmatprep.mubr.bf16.mxu0 0
        %1848 = vmatmul.mubr.bf16.gmra.mrb[0].mxu0 %v1454
        %v1849 = vpop.f32.mrb[0].mxu0
        %v1850 = vadd.f32 %v1641, %v1849
        %v1851 = vpop.f32.mrb[0].mxu0
        %v1852 = vpop.f32.mrb[0].mxu0
        %v1853 = vadd.f32 %v1644, %v1852
        %v1854 = vpop.f32.mrb[0].mxu0
        %1855 = vmatprep.mubr.bf16.mxu0 0
        %1856 = vmatmul.mubr.bf16.gmra.mrb[0].mxu0 %v1455
        %v1857 = vpop.f32.mrb[0].mxu0
        %v1858 = vadd.f32 %v1649, %v1857
        %v1859 = vpop.f32.mrb[0].mxu0
        %v1860 = vpop.f32.mrb[0].mxu0
        %v1861 = vadd.f32 %v1652, %v1860
        %v1862 = vpop.f32.mrb[0].mxu0
        %1863 = vmatprep.mubr.bf16.mxu0 0
        %1864 = vmatmul.mubr.bf16.gmra.mrb[0].mxu0 %v1456
        %v1865 = vpop.f32.mrb[0].mxu0
        %v1866 = vadd.f32 %v1657, %v1865
        %v1867 = vpop.f32.mrb[0].mxu0
        %v1868 = vpop.f32.mrb[0].mxu0
        %v1869 = vadd.f32 %v1660, %v1868
        %v1870 = vpop.f32.mrb[0].mxu0
        %1871 = vmatprep.mubr.bf16.mxu0 0
        %1872 = vmatmul.mubr.bf16.gmra.mrb[0].mxu0 %v1457
        %v1873 = vpop.f32.mrb[0].mxu0
        %v1874 = vadd.f32 %v1665, %v1873
        %v1875 = vpop.f32.mrb[0].mxu0
        %v1876 = vpop.f32.mrb[0].mxu0
        %v1877 = vadd.f32 %v1668, %v1876
        %v1878 = vpop.f32.mrb[0].mxu0
        %1879 = vmatprep.mubr.bf16.mxu0 0
        %1880 = vmatmul.mubr.bf16.gmra.mrb[0].mxu0 %v1458
        %v1881 = vpop.f32.mrb[0].mxu0
        %v1882 = vadd.f32 %v1673, %v1881
        %v1883 = vpop.f32.mrb[0].mxu0
        %v1884 = vpop.f32.mrb[0].mxu0
        %v1885 = vadd.f32 %v1676, %v1884
        %v1886 = vpop.f32.mrb[0].mxu0
        %1887 = vmatprep.mubr.bf16.mxu0 0
        %1888 = vmatmul.mubr.bf16.gmra.mrb[0].mxu0 %v1459
        %v1889 = vpop.f32.mrb[0].mxu0
        %v1890 = vadd.f32 %v1681, %v1889
        %v1891 = vpop.f32.mrb[0].mxu0
        %v1892 = vpop.f32.mrb[0].mxu0
        %v1893 = vadd.f32 %v1684, %v1892
        %v1894 = vpop.f32.mrb[0].mxu0
        %1895 = vmatprep.mubr.bf16.mxu0 0
        %1896 = vmatmul.mubr.bf16.gmra.mrb[0].mxu0 %v1460
        %v1897 = vpop.f32.mrb[0].mxu0
        %v1898 = vadd.f32 %v1689, %v1897
        %v1899 = vpop.f32.mrb[0].mxu0
        %v1900 = vpop.f32.mrb[0].mxu0
        %v1901 = vadd.f32 %v1692, %v1900
        %v1902 = vpop.f32.mrb[0].mxu0
        %1903 = vmatprep.mubr.bf16.mxu0 0
        %1904 = vmatmul.mubr.bf16.gmra.mrb[0].mxu0 %v1461
        %v1905 = vpop.f32.mrb[0].mxu0
        %v1906 = vadd.f32 %v1697, %v1905
        %v1907 = vpop.f32.mrb[0].mxu0
        %v1908 = vpop.f32.mrb[0].mxu0
        %v1909 = vadd.f32 %v1700, %v1908
        %v1910 = vpop.f32.mrb[0].mxu0
        %1911 = vmatprep.mubr.bf16.mxu0 0
        %1912 = vmatmul.mubr.bf16.gmra.mrb[0].mxu0 %v1462
        %v1913 = vpop.f32.mrb[0].mxu0
        %v1914 = vadd.f32 %v1705, %v1913
        %v1915 = vpop.f32.mrb[0].mxu0
        %v1916 = vpop.f32.mrb[0].mxu0
        %v1917 = vadd.f32 %v1708, %v1916
        %v1918 = vpop.f32.mrb[0].mxu0
        %1919 = vmatprep.mubr.bf16.mxu0 0
        %1920 = vmatmul.mubr.bf16.gmra.mrb[0].mxu0 %v1463
        %v1921 = vpop.f32.mrb[0].mxu0
        %v1922 = vadd.f32 %v1713, %v1921
        %v1923 = vpop.f32.mrb[0].mxu0
        %v1924 = vpop.f32.mrb[0].mxu0
        %v1925 = vadd.f32 %v1716, %v1924
        %v1926 = vpop.f32.mrb[0].mxu0
        %1927 = vmatprep.mubr.bf16.mxu0 0
        %1928 = vmatmul.mubr.bf16.gmra.mrb[0].mxu0 %v1464
        %v1929 = vpop.f32.mrb[0].mxu0
        %v1930 = vadd.f32 %v1721, %v1929
        %v1931 = vpop.f32.mrb[0].mxu0
        %v1932 = vpop.f32.mrb[0].mxu0
        %v1933 = vadd.f32 %v1724, %v1932
        %v1934 = vpop.f32.mrb[0].mxu0
        %1935 = vmatprep.mubr.bf16.mxu0 0
        %1936 = vmatmul.mubr.bf16.gmra.mrb[0].mxu0 %v1465
        %v1937 = vpop.f32.mrb[0].mxu0
        %v1938 = vadd.f32 %v1729, %v1937
        %v1939 = vpop.f32.mrb[0].mxu0
        %v1940 = vpop.f32.mrb[0].mxu0
        %v1941 = vadd.f32 %v1732, %v1940
        %v1942 = vpop.f32.mrb[0].mxu0
        %1943 = vmatprep.mubr.bf16.mxu0 0
        %1944 = vmatmul.mubr.bf16.gmra.mrb[0].mxu0 %v1466
        %v1945 = vpop.f32.mrb[0].mxu0
        %v1946 = vadd.f32 %v1737, %v1945
        %v1947 = vpop.f32.mrb[0].mxu0
        %v1948 = vpop.f32.mrb[0].mxu0
        %v1949 = vadd.f32 %v1740, %v1948
        %v1950 = vpop.f32.mrb[0].mxu0
        %1951 = vmatprep.mubr.bf16.mxu0 0
        %1952 = vmatmul.mubr.bf16.gmra.mrb[0].mxu0 %v1467
        %v1953 = vpop.f32.mrb[0].mxu0
        %v1954 = vadd.f32 %v1745, %v1953
        %v1955 = vpop.f32.mrb[0].mxu0
        %v1956 = vpop.f32.mrb[0].mxu0
        %v1957 = vadd.f32 %v1748, %v1956
        %v1958 = vpop.f32.mrb[0].mxu0
        %1959 = vmatprep.mubr.bf16.mxu0 0
        %1960 = vmatmul.mubr.bf16.gmra.mrb[0].mxu0 %v1468
        %v1961 = vpop.f32.mrb[0].mxu0
        %v1962 = vadd.f32 %v1753, %v1961
        %v1963 = vpop.f32.mrb[0].mxu0
        %v1964 = vpop.f32.mrb[0].mxu0
        %v1965 = vadd.f32 %v1756, %v1964
        %v1966 = vpop.f32.mrb[0].mxu0
        %1967 = vdwg.mxu0
        %v1968 = vld [vmem:[#allocation2 + $0x2] sm:$0xff]
        %v1969 = vld [vmem:[#allocation2 + $0xa] sm:$0xff]
        %v1970 = vld [vmem:[#allocation2 + $0x1a] sm:$0xff]
        %v1971 = vld [vmem:[#allocation2 + $0x22] sm:$0xff]
        %v1972 = vld [vmem:[#allocation2 + $0x32] sm:$0xff]
        %v1973 = vld [vmem:[#allocation2 + $0x3a] sm:$0xff]
        %v1974 = vld [vmem:[#allocation2 + $0x4a] sm:$0xff]
        %v1975 = vld [vmem:[#allocation2 + $0x52] sm:$0xff]
        %v1976 = vld [vmem:[#allocation2 + $0x62] sm:$0xff]
        %v1977 = vld [vmem:[#allocation2 + $0x6a] sm:$0xff]
        %v1978 = vld [vmem:[#allocation2 + $0x7a] sm:$0xff]
        %v1979 = vld [vmem:[#allocation2 + $0x82] sm:$0xff]
        %v1980 = vld [vmem:[#allocation2 + $0x92] sm:$0xff]
        %v1981 = vld [vmem:[#allocation2 + $0x9a] sm:$0xff]
        %v1982 = vld [vmem:[#allocation2 + $0xaa] sm:$0xff]
        %v1983 = vld [vmem:[#allocation2 + $0xb2] sm:$0xff]
        %v1984 = vld [vmem:[#allocation2 + $0xc2] sm:$0xff]
        %v1985 = vld [vmem:[#allocation2 + $0xca] sm:$0xff]
        %v1986 = vld [vmem:[#allocation2 + $0xda] sm:$0xff]
        %v1987 = vld [vmem:[#allocation2 + $0xe2] sm:$0xff]
        %v1988 = vld [vmem:[#allocation2 + $0xf2] sm:$0xff]
        %v1989 = vld [vmem:[#allocation2 + $0xfa] sm:$0xff]
        %v1990 = vld [vmem:[#allocation2 + $0x10a] sm:$0xff]
        %v1991 = vld [vmem:[#allocation2 + $0x112] sm:$0xff]
        %v1992 = vld [vmem:[#allocation2 + $0x122] sm:$0xff]
        %v1993 = vld [vmem:[#allocation2 + $0x12a] sm:$0xff]
        %v1994 = vld [vmem:[#allocation2 + $0x13a] sm:$0xff]
        %v1995 = vld [vmem:[#allocation2 + $0x142] sm:$0xff]
        %v1996 = vld [vmem:[#allocation2 + $0x152] sm:$0xff]
        %v1997 = vld [vmem:[#allocation2 + $0x15a] sm:$0xff]
        %v1998 = vld [vmem:[#allocation2 + $0x16a] sm:$0xff]
        %v1999 = vld [vmem:[#allocation2 + $0x172] sm:$0xff]
        %v2000 = vpack.c.bf16 %v1969, %v1968
        %v2001 = vpack.c.bf16 %v1971, %v1970
        %v2002 = vpack.c.bf16 %v1973, %v1972
        %v2003 = vpack.c.bf16 %v1975, %v1974
        %v2004 = vpack.c.bf16 %v1977, %v1976
        %v2005 = vpack.c.bf16 %v1979, %v1978
        %v2006 = vpack.c.bf16 %v1981, %v1980
        %v2007 = vpack.c.bf16 %v1983, %v1982
        %v2008 = vpack.c.bf16 %v1985, %v1984
        %v2009 = vpack.c.bf16 %v1987, %v1986
        %v2010 = vpack.c.bf16 %v1989, %v1988
        %v2011 = vpack.c.bf16 %v1991, %v1990
        %v2012 = vpack.c.bf16 %v1993, %v1992
        %v2013 = vpack.c.bf16 %v1995, %v1994
        %v2014 = vpack.c.bf16 %v1997, %v1996
        %v2015 = vpack.c.bf16 %v1999, %v1998
        %s2016 = scalar_lea.vmem [#allocation8], 128
        %v2017 = vld [vmem:[%s2016] sm:$0xf]
        %v2018 = vld [vmem:[%s2016 + $0x4] sm:$0xf]
        %v2019 = vld [vmem:[%s2016 + $0x8] sm:$0xf]
        %v2020 = vld [vmem:[%s2016 + $0xc] sm:$0xf]
        %v2021 = vld [vmem:[%s2016 + $0x10] sm:$0xf]
        %v2022 = vld [vmem:[%s2016 + $0x14] sm:$0xf]
        %v2023 = vld [vmem:[%s2016 + $0x18] sm:$0xf]
        %v2024 = vld [vmem:[%s2016 + $0x1c] sm:$0xf]
        %v2025 = vld [vmem:[%s2016 + $0x20] sm:$0xf]
        %v2026 = vld [vmem:[%s2016 + $0x24] sm:$0xf]
        %v2027 = vld [vmem:[%s2016 + $0x28] sm:$0xf]
        %v2028 = vld [vmem:[%s2016 + $0x2c] sm:$0xf]
        %v2029 = vld [vmem:[%s2016 + $0x30] sm:$0xf]
        %v2030 = vld [vmem:[%s2016 + $0x34] sm:$0xf]
        %v2031 = vld [vmem:[%s2016 + $0x38] sm:$0xf]
        %v2032 = vld [vmem:[%s2016 + $0x3c] sm:$0xf]
        %v2049 = vunpack.c.l.b16 %v2017
        %v2050 = vunpack.c.l.b16 %v2018
        %v2051 = vunpack.c.l.b16 %v2019
        %v2052 = vunpack.c.l.b16 %v2020
        %v2053 = vunpack.c.l.b16 %v2021
        %v2054 = vunpack.c.l.b16 %v2022
        %v2055 = vunpack.c.l.b16 %v2023
        %v2056 = vunpack.c.l.b16 %v2024
        %v2057 = vunpack.c.l.b16 %v2025
        %v2058 = vunpack.c.l.b16 %v2026
        %v2059 = vunpack.c.l.b16 %v2027
        %v2060 = vunpack.c.l.b16 %v2028
        %v2061 = vunpack.c.l.b16 %v2029
        %v2062 = vunpack.c.l.b16 %v2030
        %v2063 = vunpack.c.l.b16 %v2031
        %v2064 = vunpack.c.l.b16 %v2032
        %v2065 = vpack.c.b16 %v2050, %v2049
        %v2066 = vpack.c.b16 %v2052, %v2051
        %v2067 = vpack.c.b16 %v2054, %v2053
        %v2068 = vpack.c.b16 %v2056, %v2055
        %v2069 = vpack.c.b16 %v2058, %v2057
        %v2070 = vpack.c.b16 %v2060, %v2059
        %v2071 = vpack.c.b16 %v2062, %v2061
        %v2072 = vpack.c.b16 %v2064, %v2063
        %2081 = vmatprep.subr.bf16.mxu0 0
        %2082 = vmatpush1.bf16.msra.mxu0 %v2065
        %2083 = vmatprep.subr.bf16.mxu0 0
        %2084 = vmatpush1.bf16.msra.mxu0 %v2066
        %2085 = vmatprep.subr.bf16.mxu0 0
        %2086 = vmatpush1.bf16.msra.mxu0 %v2067
        %2087 = vmatprep.subr.bf16.mxu0 0
        %2088 = vmatpush1.bf16.msra.mxu0 %v2068
        %2089 = vmatprep.subr.bf16.mxu0 0
        %2090 = vmatpush1.bf16.msra.mxu0 %v2069
        %2091 = vmatprep.subr.bf16.mxu0 0
        %2092 = vmatpush1.bf16.msra.mxu0 %v2070
        %2093 = vmatprep.subr.bf16.mxu0 0
        %2094 = vmatpush1.bf16.msra.mxu0 %v2071
        %2095 = vmatprep.subr.bf16.mxu0 0
        %2096 = vmatpush1.bf16.msra.mxu0 %v2072
        %2097 = vmatprep.subr.bf16.mxu0 0
        %2098 = vmatpush1.bf16.msra.mxu0 0
        %2099 = vmatprep.subr.bf16.mxu0 0
        %2100 = vmatpush1.bf16.msra.mxu0 0
        %2101 = vmatprep.subr.bf16.mxu0 0
        %2102 = vmatpush1.bf16.msra.mxu0 0
        %2103 = vmatprep.subr.bf16.mxu0 0
        %2104 = vmatpush1.bf16.msra.mxu0 0
        %2105 = vmatprep.subr.bf16.mxu0 0
        %2106 = vmatpush1.bf16.msra.mxu0 0
        %2107 = vmatprep.subr.bf16.mxu0 0
        %2108 = vmatpush1.bf16.msra.mxu0 0
        %2109 = vmatprep.subr.bf16.mxu0 0
        %2110 = vmatpush1.bf16.msra.mxu0 0
        %2111 = vmatprep.subr.bf16.mxu0 0
        %2112 = vmatpush1.bf16.msra.mxu0 0
        %2113 = vmatprep.mubr.bf16.mxu0 0
        %2114 = vmatmul.mubr.bf16.gmra.mrb[0].mxu0 %v2000
        %v2115 = vpop.f32.mrb[0].mxu0
        %v2116 = vadd.f32 0.0, %v2115
        %v2117 = vpop.f32.mrb[0].mxu0
        %v2118 = vpop.f32.mrb[0].mxu0
        %v2119 = vadd.f32 0.0, %v2118
        %v2120 = vpop.f32.mrb[0].mxu0
        %2121 = vmatprep.mubr.bf16.mxu0 0
        %2122 = vmatmul.mubr.bf16.gmra.mrb[0].mxu0 %v2001
        %v2123 = vpop.f32.mrb[0].mxu0
        %v2124 = vadd.f32 0.0, %v2123
        %v2125 = vpop.f32.mrb[0].mxu0
        %v2126 = vpop.f32.mrb[0].mxu0
        %v2127 = vadd.f32 0.0, %v2126
        %v2128 = vpop.f32.mrb[0].mxu0
        %2129 = vmatprep.mubr.bf16.mxu0 0
        %2130 = vmatmul.mubr.bf16.gmra.mrb[0].mxu0 %v2002
        %v2131 = vpop.f32.mrb[0].mxu0
        %v2132 = vadd.f32 0.0, %v2131
        %v2133 = vpop.f32.mrb[0].mxu0
        %v2134 = vpop.f32.mrb[0].mxu0
        %v2135 = vadd.f32 0.0, %v2134
        %v2136 = vpop.f32.mrb[0].mxu0
        %2137 = vmatprep.mubr.bf16.mxu0 0
        %2138 = vmatmul.mubr.bf16.gmra.mrb[0].mxu0 %v2003
        %v2139 = vpop.f32.mrb[0].mxu0
        %v2140 = vadd.f32 0.0, %v2139
        %v2141 = vpop.f32.mrb[0].mxu0
        %v2142 = vpop.f32.mrb[0].mxu0
        %v2143 = vadd.f32 0.0, %v2142
        %v2144 = vpop.f32.mrb[0].mxu0
        %2145 = vmatprep.mubr.bf16.mxu0 0
        %2146 = vmatmul.mubr.bf16.gmra.mrb[0].mxu0 %v2004
        %v2147 = vpop.f32.mrb[0].mxu0
        %v2148 = vadd.f32 0.0, %v2147
        %v2149 = vpop.f32.mrb[0].mxu0
        %v2150 = vpop.f32.mrb[0].mxu0
        %v2151 = vadd.f32 0.0, %v2150
        %v2152 = vpop.f32.mrb[0].mxu0
        %2153 = vmatprep.mubr.bf16.mxu0 0
        %2154 = vmatmul.mubr.bf16.gmra.mrb[0].mxu0 %v2005
        %v2155 = vpop.f32.mrb[0].mxu0
        %v2156 = vadd.f32 0.0, %v2155
        %v2157 = vpop.f32.mrb[0].mxu0
        %v2158 = vpop.f32.mrb[0].mxu0
        %v2159 = vadd.f32 0.0, %v2158
        %v2160 = vpop.f32.mrb[0].mxu0
        %2161 = vmatprep.mubr.bf16.mxu0 0
        %2162 = vmatmul.mubr.bf16.gmra.mrb[0].mxu0 %v2006
        %v2163 = vpop.f32.mrb[0].mxu0
        %v2164 = vadd.f32 0.0, %v2163
        %v2165 = vpop.f32.mrb[0].mxu0
        %v2166 = vpop.f32.mrb[0].mxu0
        %v2167 = vadd.f32 0.0, %v2166
        %v2168 = vpop.f32.mrb[0].mxu0
        %2169 = vmatprep.mubr.bf16.mxu0 0
        %2170 = vmatmul.mubr.bf16.gmra.mrb[0].mxu0 %v2007
        %v2171 = vpop.f32.mrb[0].mxu0
        %v2172 = vadd.f32 0.0, %v2171
        %v2173 = vpop.f32.mrb[0].mxu0
        %v2174 = vpop.f32.mrb[0].mxu0
        %v2175 = vadd.f32 0.0, %v2174
        %v2176 = vpop.f32.mrb[0].mxu0
        %2177 = vmatprep.mubr.bf16.mxu0 0
        %2178 = vmatmul.mubr.bf16.gmra.mrb[0].mxu0 %v2008
        %v2179 = vpop.f32.mrb[0].mxu0
        %v2180 = vadd.f32 0.0, %v2179
        %v2181 = vpop.f32.mrb[0].mxu0
        %v2182 = vpop.f32.mrb[0].mxu0
        %v2183 = vadd.f32 0.0, %v2182
        %v2184 = vpop.f32.mrb[0].mxu0
        %2185 = vmatprep.mubr.bf16.mxu0 0
        %2186 = vmatmul.mubr.bf16.gmra.mrb[0].mxu0 %v2009
        %v2187 = vpop.f32.mrb[0].mxu0
        %v2188 = vadd.f32 0.0, %v2187
        %v2189 = vpop.f32.mrb[0].mxu0
        %v2190 = vpop.f32.mrb[0].mxu0
        %v2191 = vadd.f32 0.0, %v2190
        %v2192 = vpop.f32.mrb[0].mxu0
        %2193 = vmatprep.mubr.bf16.mxu0 0
        %2194 = vmatmul.mubr.bf16.gmra.mrb[0].mxu0 %v2010
        %v2195 = vpop.f32.mrb[0].mxu0
        %v2196 = vadd.f32 0.0, %v2195
        %v2197 = vpop.f32.mrb[0].mxu0
        %v2198 = vpop.f32.mrb[0].mxu0
        %v2199 = vadd.f32 0.0, %v2198
        %v2200 = vpop.f32.mrb[0].mxu0
        %2201 = vmatprep.mubr.bf16.mxu0 0
        %2202 = vmatmul.mubr.bf16.gmra.mrb[0].mxu0 %v2011
        %v2203 = vpop.f32.mrb[0].mxu0
        %v2204 = vadd.f32 0.0, %v2203
        %v2205 = vpop.f32.mrb[0].mxu0
        %v2206 = vpop.f32.mrb[0].mxu0
        %v2207 = vadd.f32 0.0, %v2206
        %v2208 = vpop.f32.mrb[0].mxu0
        %2209 = vmatprep.mubr.bf16.mxu0 0
        %2210 = vmatmul.mubr.bf16.gmra.mrb[0].mxu0 %v2012
        %v2211 = vpop.f32.mrb[0].mxu0
        %v2212 = vadd.f32 0.0, %v2211
        %v2213 = vpop.f32.mrb[0].mxu0
        %v2214 = vpop.f32.mrb[0].mxu0
        %v2215 = vadd.f32 0.0, %v2214
        %v2216 = vpop.f32.mrb[0].mxu0
        %2217 = vmatprep.mubr.bf16.mxu0 0
        %2218 = vmatmul.mubr.bf16.gmra.mrb[0].mxu0 %v2013
        %v2219 = vpop.f32.mrb[0].mxu0
        %v2220 = vadd.f32 0.0, %v2219
        %v2221 = vpop.f32.mrb[0].mxu0
        %v2222 = vpop.f32.mrb[0].mxu0
        %v2223 = vadd.f32 0.0, %v2222
        %v2224 = vpop.f32.mrb[0].mxu0
        %2225 = vmatprep.mubr.bf16.mxu0 0
        %2226 = vmatmul.mubr.bf16.gmra.mrb[0].mxu0 %v2014
        %v2227 = vpop.f32.mrb[0].mxu0
        %v2228 = vadd.f32 0.0, %v2227
        %v2229 = vpop.f32.mrb[0].mxu0
        %v2230 = vpop.f32.mrb[0].mxu0
        %v2231 = vadd.f32 0.0, %v2230
        %v2232 = vpop.f32.mrb[0].mxu0
        %2233 = vmatprep.mubr.bf16.mxu0 0
        %2234 = vmatmul.mubr.bf16.gmra.mrb[0].mxu0 %v2015
        %v2235 = vpop.f32.mrb[0].mxu0
        %v2236 = vadd.f32 0.0, %v2235
        %v2237 = vpop.f32.mrb[0].mxu0
        %v2238 = vpop.f32.mrb[0].mxu0
        %v2239 = vadd.f32 0.0, %v2238
        %v2240 = vpop.f32.mrb[0].mxu0
        %2241 = vdwg.mxu0
        %v2242 = vadd.f32 %v1842, %v2116
        %v2243 = vadd.f32 %v1845, %v2119
        %v2244 = vadd.f32 %v1850, %v2124
        %v2245 = vadd.f32 %v1853, %v2127
        %v2246 = vadd.f32 %v1858, %v2132
        %v2247 = vadd.f32 %v1861, %v2135
        %v2248 = vadd.f32 %v1866, %v2140
        %v2249 = vadd.f32 %v1869, %v2143
        %v2250 = vadd.f32 %v1874, %v2148
        %v2251 = vadd.f32 %v1877, %v2151
        %v2252 = vadd.f32 %v1882, %v2156
        %v2253 = vadd.f32 %v1885, %v2159
        %v2254 = vadd.f32 %v1890, %v2164
        %v2255 = vadd.f32 %v1893, %v2167
        %v2256 = vadd.f32 %v1898, %v2172
        %v2257 = vadd.f32 %v1901, %v2175
        %v2258 = vadd.f32 %v1906, %v2180
        %v2259 = vadd.f32 %v1909, %v2183
        %v2260 = vadd.f32 %v1914, %v2188
        %v2261 = vadd.f32 %v1917, %v2191
        %v2262 = vadd.f32 %v1922, %v2196
        %v2263 = vadd.f32 %v1925, %v2199
        %v2264 = vadd.f32 %v1930, %v2204
        %v2265 = vadd.f32 %v1933, %v2207
        %v2266 = vadd.f32 %v1938, %v2212
        %v2267 = vadd.f32 %v1941, %v2215
        %v2268 = vadd.f32 %v1946, %v2220
        %v2269 = vadd.f32 %v1949, %v2223
        %v2270 = vadd.f32 %v1954, %v2228
        %v2271 = vadd.f32 %v1957, %v2231
        %v2272 = vadd.f32 %v1962, %v2236
        %v2273 = vadd.f32 %v1965, %v2239
        %v2274 = vld [vmem:[%s5] sm:$0x1]
        %v2276 = vlaneseq
        %v2277 = vshrl.u32 %v2276, 7
        %v2278 = vsub.s32 0, %v2277
        %v2279 = vrot.slane %v2274, %v2278
        %v2281 = vmul.f32 %v2242, %v2279
        %v2282 = vmul.f32 %v2243, %v2279
        %v2283 = vmul.f32 %v2244, %v2279
        %v2284 = vmul.f32 %v2245, %v2279
        %v2285 = vmul.f32 %v2246, %v2279
        %v2286 = vmul.f32 %v2247, %v2279
        %v2287 = vmul.f32 %v2248, %v2279
        %v2288 = vmul.f32 %v2249, %v2279
        %v2289 = vmul.f32 %v2250, %v2279
        %v2290 = vmul.f32 %v2251, %v2279
        %v2291 = vmul.f32 %v2252, %v2279
        %v2292 = vmul.f32 %v2253, %v2279
        %v2293 = vmul.f32 %v2254, %v2279
        %v2294 = vmul.f32 %v2255, %v2279
        %v2295 = vmul.f32 %v2256, %v2279
        %v2296 = vmul.f32 %v2257, %v2279
        %v2297 = vmul.f32 %v2258, %v2279
        %v2298 = vmul.f32 %v2259, %v2279
        %v2299 = vmul.f32 %v2260, %v2279
        %v2300 = vmul.f32 %v2261, %v2279
        %v2301 = vmul.f32 %v2262, %v2279
        %v2302 = vmul.f32 %v2263, %v2279
        %v2303 = vmul.f32 %v2264, %v2279
        %v2304 = vmul.f32 %v2265, %v2279
        %v2305 = vmul.f32 %v2266, %v2279
        %v2306 = vmul.f32 %v2267, %v2279
        %v2307 = vmul.f32 %v2268, %v2279
        %v2308 = vmul.f32 %v2269, %v2279
        %v2309 = vmul.f32 %v2270, %v2279
        %v2310 = vmul.f32 %v2271, %v2279
        %v2311 = vmul.f32 %v2272, %v2279
        %v2312 = vmul.f32 %v2273, %v2279
        %v2313 = vld [vmem:[%s6] sm:$0x1]
        %v2315 = vlaneseq
        %v2316 = vshrl.u32 %v2315, 7
        %v2317 = vsub.s32 0, %v2316
        %v2318 = vrot.slane %v2313, %v2317
        %v2320 = vadd.f32 %v2281, %v2318
        %v2321 = vadd.f32 %v2282, %v2318
        %v2322 = vadd.f32 %v2283, %v2318
        %v2323 = vadd.f32 %v2284, %v2318
        %v2324 = vadd.f32 %v2285, %v2318
        %v2325 = vadd.f32 %v2286, %v2318
        %v2326 = vadd.f32 %v2287, %v2318
        %v2327 = vadd.f32 %v2288, %v2318
        %v2328 = vadd.f32 %v2289, %v2318
        %v2329 = vadd.f32 %v2290, %v2318
        %v2330 = vadd.f32 %v2291, %v2318
        %v2331 = vadd.f32 %v2292, %v2318
        %v2332 = vadd.f32 %v2293, %v2318
        %v2333 = vadd.f32 %v2294, %v2318
        %v2334 = vadd.f32 %v2295, %v2318
        %v2335 = vadd.f32 %v2296, %v2318
        %v2336 = vadd.f32 %v2297, %v2318
        %v2337 = vadd.f32 %v2298, %v2318
        %v2338 = vadd.f32 %v2299, %v2318
        %v2339 = vadd.f32 %v2300, %v2318
        %v2340 = vadd.f32 %v2301, %v2318
        %v2341 = vadd.f32 %v2302, %v2318
        %v2342 = vadd.f32 %v2303, %v2318
        %v2343 = vadd.f32 %v2304, %v2318
        %v2344 = vadd.f32 %v2305, %v2318
        %v2345 = vadd.f32 %v2306, %v2318
        %v2346 = vadd.f32 %v2307, %v2318
        %v2347 = vadd.f32 %v2308, %v2318
        %v2348 = vadd.f32 %v2309, %v2318
        %v2349 = vadd.f32 %v2310, %v2318
        %v2350 = vadd.f32 %v2311, %v2318
        %v2351 = vadd.f32 %v2312, %v2318
        %v2352 = vld [vmem:[%s288] sm:$0xff]
        %v2353 = vld [vmem:[%s288 + $0x8] sm:$0xff]
        %v2354 = vld [vmem:[%s288 + $0x10] sm:$0xff]
        %v2355 = vld [vmem:[%s288 + $0x18] sm:$0xff]
        %v2356 = vld [vmem:[%s288 + $0x20] sm:$0xff]
        %v2357 = vld [vmem:[%s288 + $0x28] sm:$0xff]
        %v2358 = vld [vmem:[%s288 + $0x30] sm:$0xff]
        %v2359 = vld [vmem:[%s288 + $0x38] sm:$0xff]
        %v2360 = vld [vmem:[%s288 + $0x40] sm:$0xff]
        %v2361 = vld [vmem:[%s288 + $0x48] sm:$0xff]
        %v2362 = vld [vmem:[%s288 + $0x50] sm:$0xff]
        %v2363 = vld [vmem:[%s288 + $0x58] sm:$0xff]
        %v2364 = vld [vmem:[%s288 + $0x60] sm:$0xff]
        %v2365 = vld [vmem:[%s288 + $0x68] sm:$0xff]
        %v2366 = vld [vmem:[%s288 + $0x70] sm:$0xff]
        %v2367 = vld [vmem:[%s288 + $0x78] sm:$0xff]
        %v2368 = vld [vmem:[%s288 + $0x80] sm:$0xff]
        %v2369 = vld [vmem:[%s288 + $0x88] sm:$0xff]
        %v2370 = vld [vmem:[%s288 + $0x90] sm:$0xff]
        %v2371 = vld [vmem:[%s288 + $0x98] sm:$0xff]
        %v2372 = vld [vmem:[%s288 + $0xa0] sm:$0xff]
        %v2373 = vld [vmem:[%s288 + $0xa8] sm:$0xff]
        %v2374 = vld [vmem:[%s288 + $0xb0] sm:$0xff]
        %v2375 = vld [vmem:[%s288 + $0xb8] sm:$0xff]
        %v2376 = vld [vmem:[%s288 + $0xc0] sm:$0xff]
        %v2377 = vld [vmem:[%s288 + $0xc8] sm:$0xff]
        %v2378 = vld [vmem:[%s288 + $0xd0] sm:$0xff]
        %v2379 = vld [vmem:[%s288 + $0xd8] sm:$0xff]
        %v2380 = vld [vmem:[%s288 + $0xe0] sm:$0xff]
        %v2381 = vld [vmem:[%s288 + $0xe8] sm:$0xff]
        %v2382 = vld [vmem:[%s288 + $0xf0] sm:$0xff]
        %v2383 = vld [vmem:[%s288 + $0xf8] sm:$0xff]
        %v2384 = vadd.f32 %v2320, %v2352
        %v2385 = vadd.f32 %v2321, %v2353
        %v2386 = vadd.f32 %v2322, %v2354
        %v2387 = vadd.f32 %v2323, %v2355
        %v2388 = vadd.f32 %v2324, %v2356
        %v2389 = vadd.f32 %v2325, %v2357
        %v2390 = vadd.f32 %v2326, %v2358
        %v2391 = vadd.f32 %v2327, %v2359
        %v2392 = vadd.f32 %v2328, %v2360
        %v2393 = vadd.f32 %v2329, %v2361
        %v2394 = vadd.f32 %v2330, %v2362
        %v2395 = vadd.f32 %v2331, %v2363
        %v2396 = vadd.f32 %v2332, %v2364
        %v2397 = vadd.f32 %v2333, %v2365
        %v2398 = vadd.f32 %v2334, %v2366
        %v2399 = vadd.f32 %v2335, %v2367
        %v2400 = vadd.f32 %v2336, %v2368
        %v2401 = vadd.f32 %v2337, %v2369
        %v2402 = vadd.f32 %v2338, %v2370
        %v2403 = vadd.f32 %v2339, %v2371
        %v2404 = vadd.f32 %v2340, %v2372
        %v2405 = vadd.f32 %v2341, %v2373
        %v2406 = vadd.f32 %v2342, %v2374
        %v2407 = vadd.f32 %v2343, %v2375
        %v2408 = vadd.f32 %v2344, %v2376
        %v2409 = vadd.f32 %v2345, %v2377
        %v2410 = vadd.f32 %v2346, %v2378
        %v2411 = vadd.f32 %v2347, %v2379
        %v2412 = vadd.f32 %v2348, %v2380
        %v2413 = vadd.f32 %v2349, %v2381
        %v2414 = vadd.f32 %v2350, %v2382
        %v2415 = vadd.f32 %v2351, %v2383
        %v2416 = vmax.f32 %v2384, 0.0
        %v2417 = vmax.f32 %v2385, 0.0
        %v2418 = vmax.f32 %v2386, 0.0
        %v2419 = vmax.f32 %v2387, 0.0
        %v2420 = vmax.f32 %v2388, 0.0
        %v2421 = vmax.f32 %v2389, 0.0
        %v2422 = vmax.f32 %v2390, 0.0
        %v2423 = vmax.f32 %v2391, 0.0
        %v2424 = vmax.f32 %v2392, 0.0
        %v2425 = vmax.f32 %v2393, 0.0
        %v2426 = vmax.f32 %v2394, 0.0
        %v2427 = vmax.f32 %v2395, 0.0
        %v2428 = vmax.f32 %v2396, 0.0
        %v2429 = vmax.f32 %v2397, 0.0
        %v2430 = vmax.f32 %v2398, 0.0
        %v2431 = vmax.f32 %v2399, 0.0
        %v2432 = vmax.f32 %v2400, 0.0
        %v2433 = vmax.f32 %v2401, 0.0
        %v2434 = vmax.f32 %v2402, 0.0
        %v2435 = vmax.f32 %v2403, 0.0
        %v2436 = vmax.f32 %v2404, 0.0
        %v2437 = vmax.f32 %v2405, 0.0
        %v2438 = vmax.f32 %v2406, 0.0
        %v2439 = vmax.f32 %v2407, 0.0
        %v2440 = vmax.f32 %v2408, 0.0
        %v2441 = vmax.f32 %v2409, 0.0
        %v2442 = vmax.f32 %v2410, 0.0
        %v2443 = vmax.f32 %v2411, 0.0
        %v2444 = vmax.f32 %v2412, 0.0
        %v2445 = vmax.f32 %v2413, 0.0
        %v2446 = vmax.f32 %v2414, 0.0
        %v2447 = vmax.f32 %v2415, 0.0
        %2448 = vst [vmem:[%s326] sm:$0xff] %v2416
        %2449 = vst [vmem:[%s326 + $0x8] sm:$0xff] %v2417
        %2450 = vst [vmem:[%s326 + $0x10] sm:$0xff] %v2418
        %2451 = vst [vmem:[%s326 + $0x18] sm:$0xff] %v2419
        %2452 = vst [vmem:[%s326 + $0x20] sm:$0xff] %v2420
        %2453 = vst [vmem:[%s326 + $0x28] sm:$0xff] %v2421
        %2454 = vst [vmem:[%s326 + $0x30] sm:$0xff] %v2422
        %2455 = vst [vmem:[%s326 + $0x38] sm:$0xff] %v2423
        %2456 = vst [vmem:[%s326 + $0x40] sm:$0xff] %v2424
        %2457 = vst [vmem:[%s326 + $0x48] sm:$0xff] %v2425
        %2458 = vst [vmem:[%s326 + $0x50] sm:$0xff] %v2426
        %2459 = vst [vmem:[%s326 + $0x58] sm:$0xff] %v2427
        %2460 = vst [vmem:[%s326 + $0x60] sm:$0xff] %v2428
        %2461 = vst [vmem:[%s326 + $0x68] sm:$0xff] %v2429
        %2462 = vst [vmem:[%s326 + $0x70] sm:$0xff] %v2430
        %2463 = vst [vmem:[%s326 + $0x78] sm:$0xff] %v2431
        %2464 = vst [vmem:[%s326 + $0x80] sm:$0xff] %v2432
        %2465 = vst [vmem:[%s326 + $0x88] sm:$0xff] %v2433
        %2466 = vst [vmem:[%s326 + $0x90] sm:$0xff] %v2434
        %2467 = vst [vmem:[%s326 + $0x98] sm:$0xff] %v2435
        %2468 = vst [vmem:[%s326 + $0xa0] sm:$0xff] %v2436
        %2469 = vst [vmem:[%s326 + $0xa8] sm:$0xff] %v2437
        %2470 = vst [vmem:[%s326 + $0xb0] sm:$0xff] %v2438
        %2471 = vst [vmem:[%s326 + $0xb8] sm:$0xff] %v2439
        %2472 = vst [vmem:[%s326 + $0xc0] sm:$0xff] %v2440
        %2473 = vst [vmem:[%s326 + $0xc8] sm:$0xff] %v2441
        %2474 = vst [vmem:[%s326 + $0xd0] sm:$0xff] %v2442
        %2475 = vst [vmem:[%s326 + $0xd8] sm:$0xff] %v2443
        %2476 = vst [vmem:[%s326 + $0xe0] sm:$0xff] %v2444
        %2477 = vst [vmem:[%s326 + $0xe8] sm:$0xff] %v2445
        %2478 = vst [vmem:[%s326 + $0xf0] sm:$0xff] %v2446
        %2479 = vst [vmem:[%s326 + $0xf8] sm:$0xff] %v2447
        %s2480 = sand.u32 %s185, 1
        %s2481 = scalar_lea.sflag [#allocation5], %s2480
        %s2482 = sand.u32 %s185, 1
        %s2483 = smul.addr %s2482, 256
        %s2484 = scalar_lea.vmem [#allocation9], %s2483
        // Predicated region
        $region61: #{tpu_custom_call.1} parent=47 // pred_check
          %p2485 = pneg %p195
        $region62: #{tpu_custom_call.1} parent=47 // pred_check_branch
          %2487 = sbr.rel (%p2485) target = $region64
        $region63: #{tpu_custom_call.1} parent=47 // pred_region
          %s2488 = smul.u32 16, %s25
          %s2490 = ssub.s32 4096, 4096
          %2491 = vsyncadd %s2481, %s2490
          %s2492 = smul.addr %s2488, 2
          %s2493 = smul.addr %s2492, 128
          %s2494 = scalar_lea.hbm %s7, %s2493
          %s2495 = sshll.u32 %s2484, 4
          %s2496 = int_to_ptr.vmem [resolvable:$true] %s2495
          %2501 = dma.vmem_to_hbm [thread:$0]  %s2496, 4096, %s2494, %s2481, 128, 128, 8
        $region64: #{tpu_custom_call.1} parent=47 // pred_fallthru
          _
      $region48: #{tpu_custom_call.1} parent=5 // pred_fallthru
        _
      %p2502 = scmp.le.s32.totalorder 2, %s20
      // Predicated region
      $region65: #{tpu_custom_call.1} parent=5 // pred_check
        %p2503 = pneg %p2502
      $region66: #{tpu_custom_call.1} parent=5 // pred_check_branch
        %2505 = sbr.rel (%p2503) target = $region68
      $region67: #{tpu_custom_call.1} parent=5 // pred_region
        %s2506 = ssub.s32 %s20, 2
        // Predicated region
        $region69: #{tpu_custom_call.1} parent=67 // pred_check
          %p2507 = pneg %p201
        $region70: #{tpu_custom_call.1} parent=67 // pred_check_branch
          %2509 = sbr.rel (%p2507) target = $region72
        $region71: #{tpu_custom_call.1} parent=67 // pred_region
          %s2510 = sand.u32 %s186, 1
          %s2511 = scalar_lea.sflag [#allocation5], %s2510
          %s2512 = sand.u32 %s186, 1
          %s2513 = smul.addr %s2512, 256
          %s2514 = scalar_lea.vmem [#allocation9], %s2513
          %2515 = dma.done %s2511, 4096
        $region72: #{tpu_custom_call.1} parent=67 // pred_fallthru
          _
      $region68: #{tpu_custom_call.1} parent=5 // pred_fallthru
        _
    $region6: #{tpu_custom_call.1} parent=1 // loop_footer
      %s24 = sadd.s32 1, %s20
    $region7: #{tpu_custom_call.1} parent=1 // loop_footer_branch
      %19 = sbr.rel target = $region3
    $region8: #{tpu_custom_call.1} parent=1 // loop_exit
      _
    %2516 = vsyncpa [#allocation4], 1
    %s2517 = scalar_lea.sflag [#allocation4], 1
    %2518 = vsyncpa %s2517, 1
    %2519 = vsyncpa [#allocation7], 1
    %2520 = vsyncpa [#allocation5], 1
    %s2521 = scalar_lea.sflag [#allocation5], 1
    %2522 = vsyncpa %s2521, 1

</llo_original>
